<compile_context>
chip_gen: v5e
topology: v5e:2x2
jax: 0.10.0
libtpu: 0.0.40
codegen_flags: <defaults>
</compile_context>

<pallas_src>
import functools

import numpy as np

import jax
import jax.numpy as jnp
from jax.experimental import pallas as pl
from jax.experimental.pallas import tpu as pltpu


# ----------------------------- fused full-net kernel -------------------------
def make_fused_kernel(conv_meta, fc_meta, n_weights):
    """Build the fused per-image kernel body.

    Weight ref order (matches pack_params): per conv layer [taps_cat, bias,
    (sw, sh if pooled)], then fc [w1, b1, w2, b2, w3, b3].
    """

    def kernel(*refs):
        x_ref = refs[0]
        wrefs = refs[1:1 + n_weights]
        o_ref = refs[1 + n_weights]

        x = x_ref[0]                                   # (H, W*Cin) bf16

        # Hoisted halo masks: one (H,1) 0/1 pair per distinct H, applied as
        # multiplies (replaces per-layer iota + compare + where).
        masks = {}
        for lm in conv_meta:
            H = lm["H"]
            if H not in masks:
                rows = jax.lax.broadcasted_iota(jnp.int32, (H, 1), 0)
                masks[H] = ((rows != 0).astype(jnp.float32),
                            (rows != H - 1).astype(jnp.float32))

        wi = 0
        for lm in conv_meta:
            H, W, Cout = lm["H"], lm["W"], lm["Cout"]
            WCout = W * Cout
            taps = wrefs[wi][...]                      # (W*Cin, 3*W*Cout) bf16
            bias = wrefs[wi + 1][...]                  # (1, W*Cout) f32
            wi += 2

            # Single wide matmul for all three vertical taps, then 128-aligned
            # lane slices recover the per-tap partials.
            y = jnp.dot(x, taps, preferred_element_type=jnp.float32)
            y0 = y[:, 0 * WCout:1 * WCout]
            y1 = y[:, 1 * WCout:2 * WCout]
            y2 = y[:, 2 * WCout:3 * WCout]

            mtop, mbot = masks[H]
            # out[h] = x[h-1]@T0 + x[h]@T1 + x[h+1]@T2 ; H-padding via masked rolls.
            acc = y1
            acc = acc + mtop * pltpu.roll(y0, 1, 0)        # y0[h-1], zero at h=0
            acc = acc + mbot * pltpu.roll(y2, H - 1, 0)    # y2[h+1], zero at h=H-1
            acc = jnp.maximum(acc + bias, 0.0)             # bias + ReLU (f32)

            if lm["pool"]:
                sw = wrefs[wi][...]                    # (W*Cout, Wp*Cout) bf16 0/1
                sh = wrefs[wi + 1][...]                # (Hp, H)           bf16 0/1
                wi += 2
                # 2x2 stride-2 maxpool fused into the conv epilogue.
                # W pair-max: lane roll by one channel group (f32 max).
                t = jnp.maximum(acc, pltpu.roll(acc, WCout - Cout, 1))
                # Keep even-w groups via exact 0/1 selection matmul (bf16 MXU).
                t = jnp.dot(t.astype(jnp.bfloat16), sw,
                            preferred_element_type=jnp.float32)
                # H pair-max via sublane roll (f32 max), then keep even rows.
                t = jnp.maximum(t, pltpu.roll(t, H - 1, 0))
                t = jnp.dot(sh, t.astype(jnp.bfloat16),
                            preferred_element_type=jnp.float32)
                x = t.astype(jnp.bfloat16)             # (Hp, Wp*Cout)
            else:
                x = acc.astype(jnp.bfloat16)           # (H, W*Cout)

        # ------------------------- fused MLP head ----------------------------
        Hf = fc_meta["Hf"]
        w1_ref = wrefs[wi]                             # (Hf, Wf*Cf, hidden) bf16
        b1 = wrefs[wi + 1][...]                        # (1, hidden) f32
        w2 = wrefs[wi + 2][...]
        b2 = wrefs[wi + 3][...]
        w3 = wrefs[wi + 4][...]
        b3 = wrefs[wi + 5][...]

        # FC1 with the NCHW flatten folded into w1: contract over rows with a
        # short unrolled loop (avoids any in-kernel activation reshape).
        h = b1
        for r in range(Hf):
            h = h + jnp.dot(x[r:r + 1, :], w1_ref[r],
                            preferred_element_type=jnp.float32)
        h = jnp.maximum(h, 0.0)
        # TODO(synk): nn.Dropout(0.5) is treated as identity (eval-mode semantics).
        h = jnp.maximum(
            jnp.dot(h.astype(jnp.bfloat16), w2,
                    preferred_element_type=jnp.float32) + b2, 0.0)
        out = jnp.dot(h.astype(jnp.bfloat16), w3,
                      preferred_element_type=jnp.float32) + b3
        o_ref[0] = out.astype(o_ref.dtype)             # (1, nclass)

    return kernel


def _const_index_map(ndim):
    zeros = (0,) * ndim
    return lambda n: zeros


def vgg_forward(packed, x_nchw):
    """Forward pass: one pallas_call for the whole network."""
    n, c, h, w = x_nchw.shape
    # NCHW -> (N, H, W*C): channels fold onto the lane axis (one-time glue).
    x = jnp.transpose(x_nchw, (0, 2, 3, 1)).reshape(n, h, w * c)
    x = x.astype(jnp.bfloat16)

    weights = packed["weights"]
    conv_meta = packed["conv_meta"]
    fc_meta = packed["fc_meta"]
    nclass = fc_meta["nclass"]

    kernel = make_fused_kernel(conv_meta, fc_meta, len(weights))

    in_specs = [pl.BlockSpec((1, h, w * c), lambda i: (i, 0, 0))]
    # Weight blocks: full arrays, constant index map (same block every step).
    in_specs += [pl.BlockSpec(tuple(arr.shape), _const_index_map(arr.ndim))
                 for arr in weights]

    out = pl.pallas_call(
        kernel,
        out_shape=jax.ShapeDtypeStruct((n, 1, nclass), jnp.float32),
        grid_spec=pltpu.PrefetchScalarGridSpec(
            num_scalar_prefetch=0,
            grid=(n,),
            in_specs=in_specs,
            out_specs=pl.BlockSpec((1, 1, nclass), lambda i: (i, 0, 0)),
        ),
        compiler_params=pltpu.CompilerParams(
            dimension_semantics=("parallel",)),   # batch axis -> 2nd TC on v7x
    )(x, *weights)
    return out[:, 0, :]


# ---------------------------- parameters / packing ---------------------------
def init_params(key, conv_arch, fc_features, fc_hidden_units, num_classes=32):
    """Deterministic synthetic parameters matching the PyTorch module shapes."""
    params = {"conv": [], "fc": []}
    for (num_convs, in_c, out_c) in conv_arch:
        blk, c_in = [], in_c
        for _ in range(num_convs):
            key, k1, k2 = jax.random.split(key, 3)
            w = jax.random.normal(k1, (3, 3, c_in, out_c), jnp.float32) * 0.05
            b = jax.random.normal(k2, (out_c,), jnp.float32) * 0.05
            blk.append((w, b))
            c_in = out_c
        params["conv"].append(blk)
    dims = [fc_features, fc_hidden_units, fc_hidden_units, num_classes]
    for i in range(3):
        key, k1, k2 = jax.random.split(key, 3)
        w = jax.random.normal(k1, (dims[i], dims[i + 1]), jnp.float32) * 0.05
        b = jax.random.normal(k2, (dims[i + 1],), jnp.float32) * 0.05
        params["fc"].append((w, b))
    return params


def _toeplitz_taps(w_hwio, width):
    """HWIO (3,3,Cin,Cout) -> 3 block-Toeplitz mats (3, W*Cin, W*Cout).

    taps[kh][wi*Cin+ci, wo*Cout+co] = w[kh, wi-wo+1, ci, co]; padding=1 along
    W is folded in (out-of-range horizontal taps contribute zero).
    """
    w = np.asarray(w_hwio, np.float32)
    _, _, cin, cout = w.shape
    taps = np.zeros((3, width * cin, width * cout), np.float32)
    for kh in range(3):
        for kw in range(3):
            for wo in range(width):
                wi = wo + kw - 1
                if 0 <= wi < width:
                    taps[kh, wi * cin:(wi + 1) * cin,
                         wo * cout:(wo + 1) * cout] = w[kh, kw]
    return taps


def _pool_selectors(height, width, cout):
    """Exact 0/1 matrices that keep even-w lane groups / even rows."""
    hp, wp = height // 2, width // 2
    sw = np.zeros((width * cout, wp * cout), np.float32)
    for wo in range(wp):
        for c in range(cout):
            sw[2 * wo * cout + c, wo * cout + c] = 1.0
    sh = np.zeros((hp, height), np.float32)
    sh[np.arange(hp), 2 * np.arange(hp)] = 1.0
    return sw, sh


def pack_params(params, height, width):
    """Precompute kernel-friendly layouts: concatenated block-Toeplitz taps
    (bf16), tiled f32 biases, bf16 0/1 pool selectors, and an FC1 weight with
    the PyTorch NCHW flatten folded in.  Done once, outside the hot path."""
    weights, conv_meta = [], []
    h, w = height, width
    last_cout = None
    for blk in params["conv"]:
        for j, (w_hwio, b) in enumerate(blk):
            cin, cout = int(w_hwio.shape[2]), int(w_hwio.shape[3])
            last_cout = cout
            taps3 = _toeplitz_taps(w_hwio, w)                  # (3, W*Cin, W*Cout)
            taps_cat = np.concatenate([taps3[0], taps3[1], taps3[2]], axis=1)
            weights.append(jnp.asarray(taps_cat, jnp.bfloat16))
            weights.append(jnp.asarray(
                np.tile(np.asarray(b, np.float32)[None, :], (1, w))))
            pool = (j == len(blk) - 1)
            conv_meta.append(dict(H=h, W=w, Cin=cin, Cout=cout, pool=pool))
            if pool:
                # Pair-max wraparound lands only on discarded odd groups/rows
                # when H and W are even — enforce it.
                assert h % 2 == 0 and w % 2 == 0, "2x2 pool needs even H and W"
                sw, sh = _pool_selectors(h, w, cout)
                weights.append(jnp.asarray(sw, jnp.bfloat16))   # bf16 selectors
                weights.append(jnp.asarray(sh, jnp.bfloat16))
        h, w = h // 2, w // 2

    # FC head: fold the PyTorch NCHW flatten order into FC1, stored as
    # (Hf, Wf*Cf, hidden) so the kernel contracts row-by-row (no reshape).
    hf, wf, cf = h, w, last_cout
    (w1, b1), (w2, b2), (w3, b3) = params["fc"]
    perm = np.array([c * hf * wf + hh * wf + ww
                     for hh in range(hf) for ww in range(wf) for c in range(cf)],
                    np.int32)
    w1p = np.asarray(w1, np.float32)[perm, :].reshape(hf, wf * cf, -1)
    weights += [
        jnp.asarray(w1p, jnp.bfloat16),
        jnp.asarray(np.asarray(b1, np.float32)[None, :]),
        jnp.asarray(w2, jnp.bfloat16),
        jnp.asarray(np.asarray(b2, np.float32)[None, :]),
        jnp.asarray(w3, jnp.bfloat16),
        jnp.asarray(np.asarray(b3, np.float32)[None, :]),
    ]
    fc_meta = dict(Hf=hf, Wf=wf, Cf=cf, nclass=int(np.asarray(w3).shape[1]))
    return {"weights": weights, "conv_meta": conv_meta, "fc_meta": fc_meta}


# ------------------------------- reference -----------------------------------
def vgg_reference(params, x_nchw):
    """Pure-JAX f32 reference matching the PyTorch module (for validation)."""
    x = jnp.transpose(x_nchw, (0, 2, 3, 1)).astype(jnp.float32)
    for blk in params["conv"]:
        for (w, b) in blk:
            x = jax.lax.conv_general_dilated(
                x, w, window_strides=(1, 1), padding="SAME",
                dimension_numbers=("NHWC", "HWIO", "NHWC"))
            x = jnp.maximum(x + b[None, None, None, :], 0.0)
        x = jax.lax.reduce_window(x, -jnp.inf, jax.lax.max,
                                  (1, 2, 2, 1), (1, 2, 2, 1), "VALID")
    x = jnp.transpose(x, (0, 3, 1, 2)).reshape(x.shape[0], -1)
    (w1, b1), (w2, b2), (w3, b3) = params["fc"]
    x = jnp.maximum(x @ w1 + b1, 0.0)
    x = jnp.maximum(x @ w2 + b2, 0.0)
    return x @ w3 + b3


if __name__ == "__main__":
    # Small VGG config: two blocks -> 16x16 spatial shrinks to 4x4.
    conv_arch = ((1, 4, 8), (2, 8, 16))
    N, C, Hs, Ws = 2, 4, 16, 16
    fc_features = 16 * (Hs // 4) * (Ws // 4)   # 16 * 4 * 4 = 256
    fc_hidden_units = 64

    key = jax.random.PRNGKey(0)
    kx, kp = jax.random.split(key)
    x = jax.random.normal(kx, (N, C, Hs, Ws), dtype=jnp.float32)
    params = init_params(kp, conv_arch, fc_features, fc_hidden_units)
    packed = pack_params(params, Hs, Ws)

    fwd = jax.jit(functools.partial(vgg_forward, packed))
    out = jax.block_until_ready(fwd(x))

    assert out.shape == (N, 32), out.shape
    assert bool(jnp.all(jnp.isfinite(out)))

    # Validate against the pure-JAX f32 reference (bf16 MXU inputs -> loose tol).
    ref = vgg_reference(params, x)
    err = float(jnp.max(jnp.abs(out - ref)))
    assert err < 5e-2, err

    print("KERNEL_OK")
</pallas_src>

<mosaic_0001>
module attributes {stable_mosaic.version = 11 : i64} {
  func.func @kernel(%arg0: i32, %arg1: memref<1x16x64xbf16, #tpu.memory_space<vmem>>, %arg2: memref<64x384xbf16, #tpu.memory_space<vmem>>, %arg3: memref<1x128xf32, #tpu.memory_space<vmem>>, %arg4: memref<128x64xbf16, #tpu.memory_space<vmem>>, %arg5: memref<8x16xbf16, #tpu.memory_space<vmem>>, %arg6: memref<64x384xbf16, #tpu.memory_space<vmem>>, %arg7: memref<1x128xf32, #tpu.memory_space<vmem>>, %arg8: memref<128x384xbf16, #tpu.memory_space<vmem>>, %arg9: memref<1x128xf32, #tpu.memory_space<vmem>>, %arg10: memref<128x64xbf16, #tpu.memory_space<vmem>>, %arg11: memref<4x8xbf16, #tpu.memory_space<vmem>>, %arg12: memref<4x64x64xbf16, #tpu.memory_space<vmem>>, %arg13: memref<1x64xf32, #tpu.memory_space<vmem>>, %arg14: memref<64x64xbf16, #tpu.memory_space<vmem>>, %arg15: memref<1x64xf32, #tpu.memory_space<vmem>>, %arg16: memref<64x32xbf16, #tpu.memory_space<vmem>>, %arg17: memref<1x32xf32, #tpu.memory_space<vmem>>, %arg18: memref<1x1x32xf32, #tpu.memory_space<vmem>>) attributes {dimension_semantics = [#tpu.dimension_semantics<parallel>], iteration_bounds = array<i64: 2>, scalar_prefetch = 0 : i64, scratch_operands = 0 : i64, tpu.core_type = #tpu.core_type<tc>, window_params = [{transform_indices = @transform_0, window_bounds = array<i64: 1, 16, 64>}, {pipeline_mode = #tpu.pipeline_mode<synchronous>, transform_indices = @transform_1, window_bounds = array<i64: 64, 384>}, {pipeline_mode = #tpu.pipeline_mode<synchronous>, transform_indices = @transform_2, window_bounds = array<i64: 1, 128>}, {pipeline_mode = #tpu.pipeline_mode<synchronous>, transform_indices = @transform_3, window_bounds = array<i64: 128, 64>}, {pipeline_mode = #tpu.pipeline_mode<synchronous>, transform_indices = @transform_4, window_bounds = array<i64: 8, 16>}, {pipeline_mode = #tpu.pipeline_mode<synchronous>, transform_indices = @transform_5, window_bounds = array<i64: 64, 384>}, {pipeline_mode = #tpu.pipeline_mode<synchronous>, transform_indices = @transform_6, window_bounds = array<i64: 1, 128>}, {pipeline_mode = #tpu.pipeline_mode<synchronous>, transform_indices = @transform_7, window_bounds = array<i64: 128, 384>}, {pipeline_mode = #tpu.pipeline_mode<synchronous>, transform_indices = @transform_8, window_bounds = array<i64: 1, 128>}, {pipeline_mode = #tpu.pipeline_mode<synchronous>, transform_indices = @transform_9, window_bounds = array<i64: 128, 64>}, {pipeline_mode = #tpu.pipeline_mode<synchronous>, transform_indices = @transform_10, window_bounds = array<i64: 4, 8>}, {pipeline_mode = #tpu.pipeline_mode<synchronous>, transform_indices = @transform_11, window_bounds = array<i64: 4, 64, 64>}, {pipeline_mode = #tpu.pipeline_mode<synchronous>, transform_indices = @transform_12, window_bounds = array<i64: 1, 64>}, {pipeline_mode = #tpu.pipeline_mode<synchronous>, transform_indices = @transform_13, window_bounds = array<i64: 64, 64>}, {pipeline_mode = #tpu.pipeline_mode<synchronous>, transform_indices = @transform_14, window_bounds = array<i64: 1, 64>}, {pipeline_mode = #tpu.pipeline_mode<synchronous>, transform_indices = @transform_15, window_bounds = array<i64: 64, 32>}, {pipeline_mode = #tpu.pipeline_mode<synchronous>, transform_indices = @transform_16, window_bounds = array<i64: 1, 32>}, {transform_indices = @transform_17, window_bounds = array<i64: 1, 1, 32>}]} {
    %c0 = arith.constant 0 : index
    %c0_0 = arith.constant 0 : index
    %c0_1 = arith.constant 0 : index
    %0 = vector.load %arg1[%c0, %c0_0, %c0_1] : memref<1x16x64xbf16, #tpu.memory_space<vmem>>, vector<1x16x64xbf16>
    %1 = vector.shape_cast %0 : vector<1x16x64xbf16> to vector<16x64xbf16>
    %2 = tpu.iota {dimensions = array<i32: 0>} : vector<16x1xi32>
    %c0_i32 = arith.constant 0 : i32
    %3 = vector.broadcast %c0_i32 : i32 to vector<16x1xi32>
    %4 = arith.cmpi ne, %2, %3 : vector<16x1xi32>
    %5 = arith.extui %4 : vector<16x1xi1> to vector<16x1xi32>
    %6 = arith.sitofp %5 : vector<16x1xi32> to vector<16x1xf32>
    %c15_i32 = arith.constant 15 : i32
    %7 = vector.broadcast %c15_i32 : i32 to vector<16x1xi32>
    %8 = arith.cmpi ne, %2, %7 : vector<16x1xi32>
    %9 = arith.extui %8 : vector<16x1xi1> to vector<16x1xi32>
    %10 = arith.sitofp %9 : vector<16x1xi32> to vector<16x1xf32>
    %11 = tpu.iota {dimensions = array<i32: 0>} : vector<8x1xi32>
    %c0_i32_2 = arith.constant 0 : i32
    %12 = vector.broadcast %c0_i32_2 : i32 to vector<8x1xi32>
    %13 = arith.cmpi ne, %11, %12 : vector<8x1xi32>
    %14 = arith.extui %13 : vector<8x1xi1> to vector<8x1xi32>
    %15 = arith.sitofp %14 : vector<8x1xi32> to vector<8x1xf32>
    %c7_i32 = arith.constant 7 : i32
    %16 = vector.broadcast %c7_i32 : i32 to vector<8x1xi32>
    %17 = arith.cmpi ne, %11, %16 : vector<8x1xi32>
    %18 = arith.extui %17 : vector<8x1xi1> to vector<8x1xi32>
    %19 = arith.sitofp %18 : vector<8x1xi32> to vector<8x1xf32>
    %c0_3 = arith.constant 0 : index
    %c0_4 = arith.constant 0 : index
    %20 = vector.load %arg2[%c0_3, %c0_4] : memref<64x384xbf16, #tpu.memory_space<vmem>>, vector<64x384xbf16>
    %c0_5 = arith.constant 0 : index
    %c0_6 = arith.constant 0 : index
    %21 = vector.load %arg3[%c0_5, %c0_6] : memref<1x128xf32, #tpu.memory_space<vmem>>, vector<1x128xf32>
    %cst = arith.constant dense<0.000000e+00> : vector<16x384xf32>
    %22 = tpu.matmul %1, %20, %cst {dimension_numbers = #tpu.dot_dimension_numbers<[1], [0], [0], [1], [0, 0, 1, 1], [], []>} : vector<16x64xbf16>, vector<64x384xbf16>, vector<16x384xf32> -> vector<16x384xf32>
    %23 = vector.extract_strided_slice %22 {offsets = [0, 0], sizes = [16, 128], strides = [1, 1]} : vector<16x384xf32> to vector<16x128xf32>
    %24 = vector.extract_strided_slice %22 {offsets = [0, 128], sizes = [16, 128], strides = [1, 1]} : vector<16x384xf32> to vector<16x128xf32>
    %25 = vector.extract_strided_slice %22 {offsets = [0, 256], sizes = [16, 128], strides = [1, 1]} : vector<16x384xf32> to vector<16x128xf32>
    %c1_i32 = arith.constant 1 : i32
    %26 = tpu.dynamic_rotate %23 by %c1_i32 dim 0 : vector<16x128xf32>, i32 -> vector<16x128xf32>
    %27 = vector.broadcast %6 : vector<16x1xf32> to vector<16x128xf32>
    %28 = arith.mulf %27, %26 : vector<16x128xf32>
    %29 = arith.addf %24, %28 : vector<16x128xf32>
    %c15_i32_7 = arith.constant 15 : i32
    %30 = tpu.dynamic_rotate %25 by %c15_i32_7 dim 0 : vector<16x128xf32>, i32 -> vector<16x128xf32>
    %31 = vector.broadcast %10 : vector<16x1xf32> to vector<16x128xf32>
    %32 = arith.mulf %31, %30 : vector<16x128xf32>
    %33 = arith.addf %29, %32 : vector<16x128xf32>
    %34 = vector.broadcast %21 : vector<1x128xf32> to vector<16x128xf32>
    %35 = arith.addf %33, %34 : vector<16x128xf32>
    %cst_8 = arith.constant 0.000000e+00 : f32
    %36 = vector.broadcast %cst_8 : f32 to vector<16x128xf32>
    %37 = arith.maximumf %35, %36 : vector<16x128xf32>
    %c0_9 = arith.constant 0 : index
    %c0_10 = arith.constant 0 : index
    %38 = vector.load %arg4[%c0_9, %c0_10] : memref<128x64xbf16, #tpu.memory_space<vmem>>, vector<128x64xbf16>
    %c0_11 = arith.constant 0 : index
    %c0_12 = arith.constant 0 : index
    %39 = vector.load %arg5[%c0_11, %c0_12] : memref<8x16xbf16, #tpu.memory_space<vmem>>, vector<8x16xbf16>
    %c120_i32 = arith.constant 120 : i32
    %40 = tpu.dynamic_rotate %37 by %c120_i32 dim 1 : vector<16x128xf32>, i32 -> vector<16x128xf32>
    %41 = arith.maximumf %37, %40 : vector<16x128xf32>
    %42 = arith.truncf %41 : vector<16x128xf32> to vector<16x128xbf16>
    %cst_13 = arith.constant dense<0.000000e+00> : vector<16x64xf32>
    %43 = tpu.matmul %42, %38, %cst_13 {dimension_numbers = #tpu.dot_dimension_numbers<[1], [0], [0], [1], [0, 0, 1, 1], [], []>} : vector<16x128xbf16>, vector<128x64xbf16>, vector<16x64xf32> -> vector<16x64xf32>
    %c15_i32_14 = arith.constant 15 : i32
    %44 = tpu.dynamic_rotate %43 by %c15_i32_14 dim 0 : vector<16x64xf32>, i32 -> vector<16x64xf32>
    %45 = arith.maximumf %43, %44 : vector<16x64xf32>
    %46 = arith.truncf %45 : vector<16x64xf32> to vector<16x64xbf16>
    %cst_15 = arith.constant dense<0.000000e+00> : vector<8x64xf32>
    %47 = tpu.matmul %39, %46, %cst_15 {dimension_numbers = #tpu.dot_dimension_numbers<[1], [0], [0], [1], [0, 0, 1, 1], [], []>} : vector<8x16xbf16>, vector<16x64xbf16>, vector<8x64xf32> -> vector<8x64xf32>
    %48 = arith.truncf %47 : vector<8x64xf32> to vector<8x64xbf16>
    %c0_16 = arith.constant 0 : index
    %c0_17 = arith.constant 0 : index
    %49 = vector.load %arg6[%c0_16, %c0_17] : memref<64x384xbf16, #tpu.memory_space<vmem>>, vector<64x384xbf16>
    %c0_18 = arith.constant 0 : index
    %c0_19 = arith.constant 0 : index
    %50 = vector.load %arg7[%c0_18, %c0_19] : memref<1x128xf32, #tpu.memory_space<vmem>>, vector<1x128xf32>
    %cst_20 = arith.constant dense<0.000000e+00> : vector<8x384xf32>
    %51 = tpu.matmul %48, %49, %cst_20 {dimension_numbers = #tpu.dot_dimension_numbers<[1], [0], [0], [1], [0, 0, 1, 1], [], []>} : vector<8x64xbf16>, vector<64x384xbf16>, vector<8x384xf32> -> vector<8x384xf32>
    %52 = vector.extract_strided_slice %51 {offsets = [0, 0], sizes = [8, 128], strides = [1, 1]} : vector<8x384xf32> to vector<8x128xf32>
    %53 = vector.extract_strided_slice %51 {offsets = [0, 128], sizes = [8, 128], strides = [1, 1]} : vector<8x384xf32> to vector<8x128xf32>
    %54 = vector.extract_strided_slice %51 {offsets = [0, 256], sizes = [8, 128], strides = [1, 1]} : vector<8x384xf32> to vector<8x128xf32>
    %c1_i32_21 = arith.constant 1 : i32
    %55 = tpu.dynamic_rotate %52 by %c1_i32_21 dim 0 : vector<8x128xf32>, i32 -> vector<8x128xf32>
    %56 = vector.broadcast %15 : vector<8x1xf32> to vector<8x128xf32>
    %57 = arith.mulf %56, %55 : vector<8x128xf32>
    %58 = arith.addf %53, %57 : vector<8x128xf32>
    %c7_i32_22 = arith.constant 7 : i32
    %59 = tpu.dynamic_rotate %54 by %c7_i32_22 dim 0 : vector<8x128xf32>, i32 -> vector<8x128xf32>
    %60 = vector.broadcast %19 : vector<8x1xf32> to vector<8x128xf32>
    %61 = arith.mulf %60, %59 : vector<8x128xf32>
    %62 = arith.addf %58, %61 : vector<8x128xf32>
    %63 = vector.broadcast %50 : vector<1x128xf32> to vector<8x128xf32>
    %64 = arith.addf %62, %63 : vector<8x128xf32>
    %cst_23 = arith.constant 0.000000e+00 : f32
    %65 = vector.broadcast %cst_23 : f32 to vector<8x128xf32>
    %66 = arith.maximumf %64, %65 : vector<8x128xf32>
    %67 = arith.truncf %66 : vector<8x128xf32> to vector<8x128xbf16>
    %c0_24 = arith.constant 0 : index
    %c0_25 = arith.constant 0 : index
    %68 = vector.load %arg8[%c0_24, %c0_25] : memref<128x384xbf16, #tpu.memory_space<vmem>>, vector<128x384xbf16>
    %c0_26 = arith.constant 0 : index
    %c0_27 = arith.constant 0 : index
    %69 = vector.load %arg9[%c0_26, %c0_27] : memref<1x128xf32, #tpu.memory_space<vmem>>, vector<1x128xf32>
    %cst_28 = arith.constant dense<0.000000e+00> : vector<8x384xf32>
    %70 = tpu.matmul %67, %68, %cst_28 {dimension_numbers = #tpu.dot_dimension_numbers<[1], [0], [0], [1], [0, 0, 1, 1], [], []>} : vector<8x128xbf16>, vector<128x384xbf16>, vector<8x384xf32> -> vector<8x384xf32>
    %71 = vector.extract_strided_slice %70 {offsets = [0, 0], sizes = [8, 128], strides = [1, 1]} : vector<8x384xf32> to vector<8x128xf32>
    %72 = vector.extract_strided_slice %70 {offsets = [0, 128], sizes = [8, 128], strides = [1, 1]} : vector<8x384xf32> to vector<8x128xf32>
    %73 = vector.extract_strided_slice %70 {offsets = [0, 256], sizes = [8, 128], strides = [1, 1]} : vector<8x384xf32> to vector<8x128xf32>
    %c1_i32_29 = arith.constant 1 : i32
    %74 = tpu.dynamic_rotate %71 by %c1_i32_29 dim 0 : vector<8x128xf32>, i32 -> vector<8x128xf32>
    %75 = vector.broadcast %15 : vector<8x1xf32> to vector<8x128xf32>
    %76 = arith.mulf %75, %74 : vector<8x128xf32>
    %77 = arith.addf %72, %76 : vector<8x128xf32>
    %c7_i32_30 = arith.constant 7 : i32
    %78 = tpu.dynamic_rotate %73 by %c7_i32_30 dim 0 : vector<8x128xf32>, i32 -> vector<8x128xf32>
    %79 = vector.broadcast %19 : vector<8x1xf32> to vector<8x128xf32>
    %80 = arith.mulf %79, %78 : vector<8x128xf32>
    %81 = arith.addf %77, %80 : vector<8x128xf32>
    %82 = vector.broadcast %69 : vector<1x128xf32> to vector<8x128xf32>
    %83 = arith.addf %81, %82 : vector<8x128xf32>
    %cst_31 = arith.constant 0.000000e+00 : f32
    %84 = vector.broadcast %cst_31 : f32 to vector<8x128xf32>
    %85 = arith.maximumf %83, %84 : vector<8x128xf32>
    %c0_32 = arith.constant 0 : index
    %c0_33 = arith.constant 0 : index
    %86 = vector.load %arg10[%c0_32, %c0_33] : memref<128x64xbf16, #tpu.memory_space<vmem>>, vector<128x64xbf16>
    %c0_34 = arith.constant 0 : index
    %c0_35 = arith.constant 0 : index
    %87 = vector.load %arg11[%c0_34, %c0_35] : memref<4x8xbf16, #tpu.memory_space<vmem>>, vector<4x8xbf16>
    %c112_i32 = arith.constant 112 : i32
    %88 = tpu.dynamic_rotate %85 by %c112_i32 dim 1 : vector<8x128xf32>, i32 -> vector<8x128xf32>
    %89 = arith.maximumf %85, %88 : vector<8x128xf32>
    %90 = arith.truncf %89 : vector<8x128xf32> to vector<8x128xbf16>
    %cst_36 = arith.constant dense<0.000000e+00> : vector<8x64xf32>
    %91 = tpu.matmul %90, %86, %cst_36 {dimension_numbers = #tpu.dot_dimension_numbers<[1], [0], [0], [1], [0, 0, 1, 1], [], []>} : vector<8x128xbf16>, vector<128x64xbf16>, vector<8x64xf32> -> vector<8x64xf32>
    %c7_i32_37 = arith.constant 7 : i32
    %92 = tpu.dynamic_rotate %91 by %c7_i32_37 dim 0 : vector<8x64xf32>, i32 -> vector<8x64xf32>
    %93 = arith.maximumf %91, %92 : vector<8x64xf32>
    %94 = arith.truncf %93 : vector<8x64xf32> to vector<8x64xbf16>
    %cst_38 = arith.constant dense<0.000000e+00> : vector<4x64xf32>
    %95 = tpu.matmul %87, %94, %cst_38 {dimension_numbers = #tpu.dot_dimension_numbers<[1], [0], [0], [1], [0, 0, 1, 1], [], []>} : vector<4x8xbf16>, vector<8x64xbf16>, vector<4x64xf32> -> vector<4x64xf32>
    %96 = arith.truncf %95 : vector<4x64xf32> to vector<4x64xbf16>
    %c0_39 = arith.constant 0 : index
    %c0_40 = arith.constant 0 : index
    %97 = vector.load %arg13[%c0_39, %c0_40] : memref<1x64xf32, #tpu.memory_space<vmem>>, vector<1x64xf32>
    %c0_41 = arith.constant 0 : index
    %c0_42 = arith.constant 0 : index
    %98 = vector.load %arg14[%c0_41, %c0_42] : memref<64x64xbf16, #tpu.memory_space<vmem>>, vector<64x64xbf16>
    %c0_43 = arith.constant 0 : index
    %c0_44 = arith.constant 0 : index
    %99 = vector.load %arg15[%c0_43, %c0_44] : memref<1x64xf32, #tpu.memory_space<vmem>>, vector<1x64xf32>
    %c0_45 = arith.constant 0 : index
    %c0_46 = arith.constant 0 : index
    %100 = vector.load %arg16[%c0_45, %c0_46] : memref<64x32xbf16, #tpu.memory_space<vmem>>, vector<64x32xbf16>
    %c0_47 = arith.constant 0 : index
    %c0_48 = arith.constant 0 : index
    %101 = vector.load %arg17[%c0_47, %c0_48] : memref<1x32xf32, #tpu.memory_space<vmem>>, vector<1x32xf32>
    %102 = vector.extract_strided_slice %96 {offsets = [0, 0], sizes = [1, 64], strides = [1, 1]} : vector<4x64xbf16> to vector<1x64xbf16>
    %c0_49 = arith.constant 0 : index
    %c0_50 = arith.constant 0 : index
    %c0_51 = arith.constant 0 : index
    %103 = vector.load %arg12[%c0_49, %c0_50, %c0_51] : memref<4x64x64xbf16, #tpu.memory_space<vmem>>, vector<1x64x64xbf16>
    %104 = vector.shape_cast %103 : vector<1x64x64xbf16> to vector<64x64xbf16>
    %cst_52 = arith.constant dense<0.000000e+00> : vector<1x64xf32>
    %105 = tpu.matmul %102, %104, %cst_52 {dimension_numbers = #tpu.dot_dimension_numbers<[1], [0], [0], [1], [0, 0, 1, 1], [], []>} : vector<1x64xbf16>, vector<64x64xbf16>, vector<1x64xf32> -> vector<1x64xf32>
    %106 = arith.addf %97, %105 : vector<1x64xf32>
    %107 = vector.extract_strided_slice %96 {offsets = [1, 0], sizes = [1, 64], strides = [1, 1]} : vector<4x64xbf16> to vector<1x64xbf16>
    %c1 = arith.constant 1 : index
    %c0_53 = arith.constant 0 : index
    %c0_54 = arith.constant 0 : index
    %108 = vector.load %arg12[%c1, %c0_53, %c0_54] : memref<4x64x64xbf16, #tpu.memory_space<vmem>>, vector<1x64x64xbf16>
    %109 = vector.shape_cast %108 : vector<1x64x64xbf16> to vector<64x64xbf16>
    %cst_55 = arith.constant dense<0.000000e+00> : vector<1x64xf32>
    %110 = tpu.matmul %107, %109, %cst_55 {dimension_numbers = #tpu.dot_dimension_numbers<[1], [0], [0], [1], [0, 0, 1, 1], [], []>} : vector<1x64xbf16>, vector<64x64xbf16>, vector<1x64xf32> -> vector<1x64xf32>
    %111 = arith.addf %106, %110 : vector<1x64xf32>
    %112 = vector.extract_strided_slice %96 {offsets = [2, 0], sizes = [1, 64], strides = [1, 1]} : vector<4x64xbf16> to vector<1x64xbf16>
    %c2 = arith.constant 2 : index
    %c0_56 = arith.constant 0 : index
    %c0_57 = arith.constant 0 : index
    %113 = vector.load %arg12[%c2, %c0_56, %c0_57] : memref<4x64x64xbf16, #tpu.memory_space<vmem>>, vector<1x64x64xbf16>
    %114 = vector.shape_cast %113 : vector<1x64x64xbf16> to vector<64x64xbf16>
    %cst_58 = arith.constant dense<0.000000e+00> : vector<1x64xf32>
    %115 = tpu.matmul %112, %114, %cst_58 {dimension_numbers = #tpu.dot_dimension_numbers<[1], [0], [0], [1], [0, 0, 1, 1], [], []>} : vector<1x64xbf16>, vector<64x64xbf16>, vector<1x64xf32> -> vector<1x64xf32>
    %116 = arith.addf %111, %115 : vector<1x64xf32>
    %117 = vector.extract_strided_slice %96 {offsets = [3, 0], sizes = [1, 64], strides = [1, 1]} : vector<4x64xbf16> to vector<1x64xbf16>
    %c3 = arith.constant 3 : index
    %c0_59 = arith.constant 0 : index
    %c0_60 = arith.constant 0 : index
    %118 = vector.load %arg12[%c3, %c0_59, %c0_60] : memref<4x64x64xbf16, #tpu.memory_space<vmem>>, vector<1x64x64xbf16>
    %119 = vector.shape_cast %118 : vector<1x64x64xbf16> to vector<64x64xbf16>
    %cst_61 = arith.constant dense<0.000000e+00> : vector<1x64xf32>
    %120 = tpu.matmul %117, %119, %cst_61 {dimension_numbers = #tpu.dot_dimension_numbers<[1], [0], [0], [1], [0, 0, 1, 1], [], []>} : vector<1x64xbf16>, vector<64x64xbf16>, vector<1x64xf32> -> vector<1x64xf32>
    %121 = arith.addf %116, %120 : vector<1x64xf32>
    %cst_62 = arith.constant 0.000000e+00 : f32
    %122 = vector.broadcast %cst_62 : f32 to vector<1x64xf32>
    %123 = arith.maximumf %121, %122 : vector<1x64xf32>
    %124 = arith.truncf %123 : vector<1x64xf32> to vector<1x64xbf16>
    %cst_63 = arith.constant dense<0.000000e+00> : vector<1x64xf32>
    %125 = tpu.matmul %124, %98, %cst_63 {dimension_numbers = #tpu.dot_dimension_numbers<[1], [0], [0], [1], [0, 0, 1, 1], [], []>} : vector<1x64xbf16>, vector<64x64xbf16>, vector<1x64xf32> -> vector<1x64xf32>
    %126 = arith.addf %125, %99 : vector<1x64xf32>
    %cst_64 = arith.constant 0.000000e+00 : f32
    %127 = vector.broadcast %cst_64 : f32 to vector<1x64xf32>
    %128 = arith.maximumf %126, %127 : vector<1x64xf32>
    %129 = arith.truncf %128 : vector<1x64xf32> to vector<1x64xbf16>
    %cst_65 = arith.constant dense<0.000000e+00> : vector<1x32xf32>
    %130 = tpu.matmul %129, %100, %cst_65 {dimension_numbers = #tpu.dot_dimension_numbers<[1], [0], [0], [1], [0, 0, 1, 1], [], []>} : vector<1x64xbf16>, vector<64x32xbf16>, vector<1x32xf32> -> vector<1x32xf32>
    %131 = arith.addf %130, %101 : vector<1x32xf32>
    %c0_66 = arith.constant 0 : index
    %c0_67 = arith.constant 0 : index
    %c0_68 = arith.constant 0 : index
    %132 = vector.load %arg18[%c0_66, %c0_67, %c0_68] : memref<1x1x32xf32, #tpu.memory_space<vmem>>, vector<1x1x32xf32>
    %133 = vector.shape_cast %132 : vector<1x1x32xf32> to vector<1x32xf32>
    %134 = vector.shape_cast %131 : vector<1x32xf32> to vector<1x1x32xf32>
    tpu.vector_store %arg18[%c0_66, %c0_67, %c0_68], %134 {strides = array<i32>} : memref<1x1x32xf32, #tpu.memory_space<vmem>>, vector<1x1x32xf32>,
    return
  }
  func.func @transform_0(%arg0: i32) -> (i32, i32, i32) {
    %c0_i32 = arith.constant 0 : i32
    %c0_i32_0 = arith.constant 0 : i32
    %c0_i32_1 = arith.constant 0 : i32
    return %arg0, %c0_i32, %c0_i32_0 : i32, i32, i32
  }
  func.func @transform_1(%arg0: i32) -> (i32, i32) {
    %c0_i32 = arith.constant 0 : i32
    %c0_i32_0 = arith.constant 0 : i32
    %c0_i32_1 = arith.constant 0 : i32
    return %c0_i32, %c0_i32_0 : i32, i32
  }
  func.func @transform_2(%arg0: i32) -> (i32, i32) {
    %c0_i32 = arith.constant 0 : i32
    %c0_i32_0 = arith.constant 0 : i32
    %c0_i32_1 = arith.constant 0 : i32
    return %c0_i32, %c0_i32_0 : i32, i32
  }
  func.func @transform_3(%arg0: i32) -> (i32, i32) {
    %c0_i32 = arith.constant 0 : i32
    %c0_i32_0 = arith.constant 0 : i32
    %c0_i32_1 = arith.constant 0 : i32
    return %c0_i32, %c0_i32_0 : i32, i32
  }
  func.func @transform_4(%arg0: i32) -> (i32, i32) {
    %c0_i32 = arith.constant 0 : i32
    %c0_i32_0 = arith.constant 0 : i32
    %c0_i32_1 = arith.constant 0 : i32
    return %c0_i32, %c0_i32_0 : i32, i32
  }
  func.func @transform_5(%arg0: i32) -> (i32, i32) {
    %c0_i32 = arith.constant 0 : i32
    %c0_i32_0 = arith.constant 0 : i32
    %c0_i32_1 = arith.constant 0 : i32
    return %c0_i32, %c0_i32_0 : i32, i32
  }
  func.func @transform_6(%arg0: i32) -> (i32, i32) {
    %c0_i32 = arith.constant 0 : i32
    %c0_i32_0 = arith.constant 0 : i32
    %c0_i32_1 = arith.constant 0 : i32
    return %c0_i32, %c0_i32_0 : i32, i32
  }
  func.func @transform_7(%arg0: i32) -> (i32, i32) {
    %c0_i32 = arith.constant 0 : i32
    %c0_i32_0 = arith.constant 0 : i32
    %c0_i32_1 = arith.constant 0 : i32
    return %c0_i32, %c0_i32_0 : i32, i32
  }
  func.func @transform_8(%arg0: i32) -> (i32, i32) {
    %c0_i32 = arith.constant 0 : i32
    %c0_i32_0 = arith.constant 0 : i32
    %c0_i32_1 = arith.constant 0 : i32
    return %c0_i32, %c0_i32_0 : i32, i32
  }
  func.func @transform_9(%arg0: i32) -> (i32, i32) {
    %c0_i32 = arith.constant 0 : i32
    %c0_i32_0 = arith.constant 0 : i32
    %c0_i32_1 = arith.constant 0 : i32
    return %c0_i32, %c0_i32_0 : i32, i32
  }
  func.func @transform_10(%arg0: i32) -> (i32, i32) {
    %c0_i32 = arith.constant 0 : i32
    %c0_i32_0 = arith.constant 0 : i32
    %c0_i32_1 = arith.constant 0 : i32
    return %c0_i32, %c0_i32_0 : i32, i32
  }
  func.func @transform_11(%arg0: i32) -> (i32, i32, i32) {
    %c0_i32 = arith.constant 0 : i32
    %c0_i32_0 = arith.constant 0 : i32
    %c0_i32_1 = arith.constant 0 : i32
    %c0_i32_2 = arith.constant 0 : i32
    return %c0_i32, %c0_i32_0, %c0_i32_1 : i32, i32, i32
  }
  func.func @transform_12(%arg0: i32) -> (i32, i32) {
    %c0_i32 = arith.constant 0 : i32
    %c0_i32_0 = arith.constant 0 : i32
    %c0_i32_1 = arith.constant 0 : i32
    return %c0_i32, %c0_i32_0 : i32, i32
  }
  func.func @transform_13(%arg0: i32) -> (i32, i32) {
    %c0_i32 = arith.constant 0 : i32
    %c0_i32_0 = arith.constant 0 : i32
    %c0_i32_1 = arith.constant 0 : i32
    return %c0_i32, %c0_i32_0 : i32, i32
  }
  func.func @transform_14(%arg0: i32) -> (i32, i32) {
    %c0_i32 = arith.constant 0 : i32
    %c0_i32_0 = arith.constant 0 : i32
    %c0_i32_1 = arith.constant 0 : i32
    return %c0_i32, %c0_i32_0 : i32, i32
  }
  func.func @transform_15(%arg0: i32) -> (i32, i32) {
    %c0_i32 = arith.constant 0 : i32
    %c0_i32_0 = arith.constant 0 : i32
    %c0_i32_1 = arith.constant 0 : i32
    return %c0_i32, %c0_i32_0 : i32, i32
  }
  func.func @transform_16(%arg0: i32) -> (i32, i32) {
    %c0_i32 = arith.constant 0 : i32
    %c0_i32_0 = arith.constant 0 : i32
    %c0_i32_1 = arith.constant 0 : i32
    return %c0_i32, %c0_i32_0 : i32, i32
  }
  func.func @transform_17(%arg0: i32) -> (i32, i32, i32) {
    %c0_i32 = arith.constant 0 : i32
    %c0_i32_0 = arith.constant 0 : i32
    %c0_i32_1 = arith.constant 0 : i32
    return %arg0, %c0_i32, %c0_i32_0 : i32, i32, i32
  }
}

</mosaic_0001>

<llo_original>
// kernel: vgg_forward.1
$region0: #{vgg_forward.1}
  #allocation0 [shape = 'u32[]', space=smem, size = 0x4, offset = 0x4, fixed_abs, tag = 'smem constant byte address 0x4 - core index']
  #allocation1 [shape = 'u32[72,128]{1,0:T(1,128)}', space=vmem, size = 0x9000, scoped, tag = 'internal scratch']
  %s0 = inlined_call_operand.vmem [shape: bf16[2,16,64], index: 0, kind: input, shape index: {}]
  %s1 = inlined_call_operand.hbm [shape: bf16[64,384], index: 1, kind: input, shape index: {}]
  %s2 = inlined_call_operand.vmem [shape: f32[1,128], index: 2, kind: input, shape index: {}]
  %s3 = inlined_call_operand.hbm [shape: bf16[128,64], index: 3, kind: input, shape index: {}]
  %s4 = inlined_call_operand.vmem [shape: bf16[8,16], index: 4, kind: input, shape index: {}]
  %s5 = inlined_call_operand.hbm [shape: bf16[64,384], index: 5, kind: input, shape index: {}]
  %s6 = inlined_call_operand.vmem [shape: f32[1,128], index: 6, kind: input, shape index: {}]
  %s7 = inlined_call_operand.vmem [shape: bf16[128,384], index: 7, kind: input, shape index: {}]
  %s8 = inlined_call_operand.vmem [shape: f32[1,128], index: 8, kind: input, shape index: {}]
  %s9 = inlined_call_operand.vmem [shape: bf16[128,64], index: 9, kind: input, shape index: {}]
  %s10 = inlined_call_operand.vmem [shape: bf16[4,8], index: 10, kind: input, shape index: {}]
  %s11 = inlined_call_operand.vmem [shape: bf16[4,64,64], index: 11, kind: input, shape index: {}]
  %s12 = inlined_call_operand.vmem [shape: f32[1,64], index: 12, kind: input, shape index: {}]
  %s13 = inlined_call_operand.hbm [shape: bf16[64,64], index: 13, kind: input, shape index: {}]
  %s14 = inlined_call_operand.vmem [shape: f32[1,64], index: 14, kind: input, shape index: {}]
  %s15 = inlined_call_operand.hbm [shape: bf16[64,32], index: 15, kind: input, shape index: {}]
  %s16 = inlined_call_operand.vmem [shape: f32[1,32], index: 16, kind: input, shape index: {}]
  %s17 = inlined_call_operand.hbm [shape: f32[2,1,32], index: 17, kind: output, shape index: {}]
  %s18 = sld [smem:[#allocation0]]
  $region121: #{vgg_forward.1} parent=0
    _
  %s20 = ssub.s32 1, %s18
  %s21 = scalar_select 0, %s20, %s18
  $region1: #{vgg_forward.1} parent=0
    #allocation2 [shape = 'u8[49152]{0}', space=vmem, size = 0xc000, scoped, tag = 'input window, operand 1, single buffered']
    #allocation3 [shape = 's32[2]{0}', space=sflag, size = 0x8, scoped, tag = 'scoped memory for vgg_forward.1']
    #allocation4 [shape = 's32[2]{0}', space=sflag, size = 0x8, scoped, tag = 'scoped memory for vgg_forward.1']
    #allocation5 [shape = 'u8[32768]{0}', space=vmem, size = 0x8000, scoped, tag = 'input window, operand 3, single buffered']
    #allocation6 [shape = 's32[1]{0}', space=sflag, size = 0x4, scoped, tag = 'scoped memory for vgg_forward.1']
    #allocation7 [shape = 'u8[49152]{0}', space=vmem, size = 0xc000, scoped, tag = 'input window, operand 5, single buffered']
    #allocation8 [shape = 'u8[16384]{0}', space=vmem, size = 0x4000, scoped, tag = 'input window, operand 13, single buffered']
    #allocation9 [shape = 's32[1]{0}', space=sflag, size = 0x4, scoped, tag = 'scoped memory for vgg_forward.1']
    #allocation10 [shape = 'u8[16384]{0}', space=vmem, size = 0x4000, scoped, tag = 'input window, operand 15, single buffered']
    #allocation11 [shape = 'u8[1024]{0}', space=vmem, size = 0x400, scoped, tag = 'output window, operand 0']
    %22 = vsyncpa [#allocation3], 0
    %23 = vsyncpa [#allocation6], 0
    %24 = vsyncpa [#allocation9], 0
    %25 = vsyncpa [#allocation4], 0
    %s26 = scalar_lea.sflag [#allocation4], 1
    %27 = vsyncpa %s26, 0
    loop: start=0, step=1, limit=4
    $region2: #{vgg_forward.1} parent=1 // loop_pre_header
      _
    $region3: #{vgg_forward.1} parent=1 // loop_header
      %s29 = sphi 0, %s33
      %p30 = scmp.ge.s32.totalorder %s29, 4
      %s39 = sphi 0, %s41
      %s42 = sphi 0, %s39
      %s43 = sphi 0, %s42
      %s59 = sphi 0, %s43
      %s63 = sphi 0, %s63
      %s65 = sphi 0, %s63
      %s66 = sphi 0, %s65
      %s80 = sphi 0, %s66
      %s84 = sphi 0, %s84
      %s86 = sphi 0, %s84
      %s87 = sphi 0, %s86
      %s101 = sphi 0, %s87
      %s105 = sphi 0, %s105
      %s107 = sphi 0, %s105
      %s108 = sphi 0, %s107
      %s122 = sphi 0, %s108
      %s126 = sphi 0, %s126
      %s128 = sphi 0, %s126
      %s129 = sphi 0, %s128
      %s143 = sphi 0, %s129
      %s147 = sphi 0, %s147
      %s149 = sphi 0, %s147
      %s150 = sphi 0, %s149
      %s164 = sphi 0, %s150
      %s168 = sphi 0, %s168
      %s170 = sphi 0, %s168
      %s171 = sphi 0, %s170
      %s185 = sphi 0, %s171
      %s189 = sphi 0, %s189
      %s191 = sphi 0, %s189
      %s192 = sphi 0, %s191
      %s206 = sphi 0, %s192
      %s210 = sphi 0, %s210
      %s212 = sphi 0, %s210
      %s213 = sphi 0, %s212
      %s227 = sphi 0, %s213
      %s231 = sphi 0, %s231
      %s233 = sphi 0, %s231
      %s234 = sphi 0, %s233
      %s248 = sphi 0, %s234
      %s252 = sphi 0, %s252
      %s254 = sphi 0, %s252
      %s255 = sphi 0, %s254
      %s269 = sphi 0, %s255
      %s273 = sphi 0, %s273
      %s275 = sphi 0, %s273
      %s276 = sphi 0, %s275
      %s290 = sphi 0, %s276
      %s294 = sphi 0, %s294
      %s296 = sphi 0, %s294
      %s297 = sphi 0, %s296
      %s311 = sphi 0, %s297
      %s315 = sphi 0, %s315
      %s317 = sphi 0, %s315
      %s318 = sphi 0, %s317
      %s332 = sphi 0, %s318
      %s336 = sphi 0, %s336
      %s338 = sphi 0, %s336
      %s339 = sphi 0, %s338
      %s353 = sphi 0, %s339
      %s357 = sphi 0, %s357
      %s359 = sphi 0, %s357
      %s360 = sphi 0, %s359
      %s374 = sphi 0, %s360
      %s378 = sphi 0, %s378
      %s380 = sphi 0, %s378
      %s381 = sphi 0, %s380
      %s395 = sphi 0, %s381
      %s401 = sphi 0, %s403
      %s404 = sphi 0, %s401
      %s405 = sphi 0, %s404
      %s421 = sphi 0, %s405
    $region4: #{vgg_forward.1} parent=1 // loop_header_branch
      %32 = sbr.rel (%p30) target = $region8
    $region5: #{vgg_forward.1} parent=1 // loop_body
      %s34 = ssub.s32 %s29, 1
      %s35 = ssub.s32 %s29, 2
      %s36 = sadd.s32 %s29, 1
      %s37 = ssub.s32 %s29, %s36
      %p38 = scmp.eq.s32.totalorder %s37, 0
      %s40 = sadd.s32 %s39, 1
      %s41 = scalar_select %p38, %s39, %s40
      %p44 = pneg %p38
      %p45 = scmp.eq.s32.totalorder %s29, 1
      %p46 = por %p44, %p45
      %p47 = scmp.ne.s32.totalorder %s39, %s42
      %p48 = scmp.eq.s32.totalorder %s29, 0
      %p49 = por %p47, %p48
      %p50 = scmp.ne.s32.totalorder %s39, %s42
      %p51 = scmp.eq.s32.totalorder %s34, 1
      %p52 = por %p50, %p51
      %p53 = scmp.ne.s32.totalorder %s42, %s43
      %p54 = scmp.eq.s32.totalorder %s34, 0
      %p55 = por %p53, %p54
      %p56 = scmp.ne.s32.totalorder %s42, %s43
      %p57 = scmp.eq.s32.totalorder %s35, 1
      %p58 = por %p56, %p57
      %p60 = scmp.ne.s32.totalorder %s43, %s59
      %p61 = scmp.eq.s32.totalorder %s35, 0
      %p62 = por %p60, %p61
      %s64 = sadd.s32 %s63, 1
      %p67 = scmp.eq.s32.totalorder %s29, 1
      %p68 = scmp.ne.s32.totalorder %s63, %s65
      %p69 = scmp.eq.s32.totalorder %s29, 0
      %p70 = por %p68, %p69
      %p71 = scmp.ne.s32.totalorder %s63, %s65
      %p72 = scmp.eq.s32.totalorder %s34, 1
      %p73 = por %p71, %p72
      %p74 = scmp.ne.s32.totalorder %s65, %s66
      %p75 = scmp.eq.s32.totalorder %s34, 0
      %p76 = por %p74, %p75
      %p77 = scmp.ne.s32.totalorder %s65, %s66
      %p78 = scmp.eq.s32.totalorder %s35, 1
      %p79 = por %p77, %p78
      %p81 = scmp.ne.s32.totalorder %s66, %s80
      %p82 = scmp.eq.s32.totalorder %s35, 0
      %p83 = por %p81, %p82
      %s85 = sadd.s32 %s84, 1
      %p88 = scmp.eq.s32.totalorder %s29, 1
      %p89 = scmp.ne.s32.totalorder %s84, %s86
      %p90 = scmp.eq.s32.totalorder %s29, 0
      %p91 = por %p89, %p90
      %p92 = scmp.ne.s32.totalorder %s84, %s86
      %p93 = scmp.eq.s32.totalorder %s34, 1
      %p94 = por %p92, %p93
      %p95 = scmp.ne.s32.totalorder %s86, %s87
      %p96 = scmp.eq.s32.totalorder %s34, 0
      %p97 = por %p95, %p96
      %p98 = scmp.ne.s32.totalorder %s86, %s87
      %p99 = scmp.eq.s32.totalorder %s35, 1
      %p100 = por %p98, %p99
      %p102 = scmp.ne.s32.totalorder %s87, %s101
      %p103 = scmp.eq.s32.totalorder %s35, 0
      %p104 = por %p102, %p103
      %s106 = sadd.s32 %s105, 1
      %p109 = scmp.eq.s32.totalorder %s29, 1
      %p110 = scmp.ne.s32.totalorder %s105, %s107
      %p111 = scmp.eq.s32.totalorder %s29, 0
      %p112 = por %p110, %p111
      %p113 = scmp.ne.s32.totalorder %s105, %s107
      %p114 = scmp.eq.s32.totalorder %s34, 1
      %p115 = por %p113, %p114
      %p116 = scmp.ne.s32.totalorder %s107, %s108
      %p117 = scmp.eq.s32.totalorder %s34, 0
      %p118 = por %p116, %p117
      %p119 = scmp.ne.s32.totalorder %s107, %s108
      %p120 = scmp.eq.s32.totalorder %s35, 1
      %p121 = por %p119, %p120
      %p123 = scmp.ne.s32.totalorder %s108, %s122
      %p124 = scmp.eq.s32.totalorder %s35, 0
      %p125 = por %p123, %p124
      %s127 = sadd.s32 %s126, 1
      %p130 = scmp.eq.s32.totalorder %s29, 1
      %p131 = scmp.ne.s32.totalorder %s126, %s128
      %p132 = scmp.eq.s32.totalorder %s29, 0
      %p133 = por %p131, %p132
      %p134 = scmp.ne.s32.totalorder %s126, %s128
      %p135 = scmp.eq.s32.totalorder %s34, 1
      %p136 = por %p134, %p135
      %p137 = scmp.ne.s32.totalorder %s128, %s129
      %p138 = scmp.eq.s32.totalorder %s34, 0
      %p139 = por %p137, %p138
      %p140 = scmp.ne.s32.totalorder %s128, %s129
      %p141 = scmp.eq.s32.totalorder %s35, 1
      %p142 = por %p140, %p141
      %p144 = scmp.ne.s32.totalorder %s129, %s143
      %p145 = scmp.eq.s32.totalorder %s35, 0
      %p146 = por %p144, %p145
      %s148 = sadd.s32 %s147, 1
      %p151 = scmp.eq.s32.totalorder %s29, 1
      %p152 = scmp.ne.s32.totalorder %s147, %s149
      %p153 = scmp.eq.s32.totalorder %s29, 0
      %p154 = por %p152, %p153
      %p155 = scmp.ne.s32.totalorder %s147, %s149
      %p156 = scmp.eq.s32.totalorder %s34, 1
      %p157 = por %p155, %p156
      %p158 = scmp.ne.s32.totalorder %s149, %s150
      %p159 = scmp.eq.s32.totalorder %s34, 0
      %p160 = por %p158, %p159
      %p161 = scmp.ne.s32.totalorder %s149, %s150
      %p162 = scmp.eq.s32.totalorder %s35, 1
      %p163 = por %p161, %p162
      %p165 = scmp.ne.s32.totalorder %s150, %s164
      %p166 = scmp.eq.s32.totalorder %s35, 0
      %p167 = por %p165, %p166
      %s169 = sadd.s32 %s168, 1
      %p172 = scmp.eq.s32.totalorder %s29, 1
      %p173 = scmp.ne.s32.totalorder %s168, %s170
      %p174 = scmp.eq.s32.totalorder %s29, 0
      %p175 = por %p173, %p174
      %p176 = scmp.ne.s32.totalorder %s168, %s170
      %p177 = scmp.eq.s32.totalorder %s34, 1
      %p178 = por %p176, %p177
      %p179 = scmp.ne.s32.totalorder %s170, %s171
      %p180 = scmp.eq.s32.totalorder %s34, 0
      %p181 = por %p179, %p180
      %p182 = scmp.ne.s32.totalorder %s170, %s171
      %p183 = scmp.eq.s32.totalorder %s35, 1
      %p184 = por %p182, %p183
      %p186 = scmp.ne.s32.totalorder %s171, %s185
      %p187 = scmp.eq.s32.totalorder %s35, 0
      %p188 = por %p186, %p187
      %s190 = sadd.s32 %s189, 1
      %p193 = scmp.eq.s32.totalorder %s29, 1
      %p194 = scmp.ne.s32.totalorder %s189, %s191
      %p195 = scmp.eq.s32.totalorder %s29, 0
      %p196 = por %p194, %p195
      %p197 = scmp.ne.s32.totalorder %s189, %s191
      %p198 = scmp.eq.s32.totalorder %s34, 1
      %p199 = por %p197, %p198
      %p200 = scmp.ne.s32.totalorder %s191, %s192
      %p201 = scmp.eq.s32.totalorder %s34, 0
      %p202 = por %p200, %p201
      %p203 = scmp.ne.s32.totalorder %s191, %s192
      %p204 = scmp.eq.s32.totalorder %s35, 1
      %p205 = por %p203, %p204
      %p207 = scmp.ne.s32.totalorder %s192, %s206
      %p208 = scmp.eq.s32.totalorder %s35, 0
      %p209 = por %p207, %p208
      %s211 = sadd.s32 %s210, 1
      %p214 = scmp.eq.s32.totalorder %s29, 1
      %p215 = scmp.ne.s32.totalorder %s210, %s212
      %p216 = scmp.eq.s32.totalorder %s29, 0
      %p217 = por %p215, %p216
      %p218 = scmp.ne.s32.totalorder %s210, %s212
      %p219 = scmp.eq.s32.totalorder %s34, 1
      %p220 = por %p218, %p219
      %p221 = scmp.ne.s32.totalorder %s212, %s213
      %p222 = scmp.eq.s32.totalorder %s34, 0
      %p223 = por %p221, %p222
      %p224 = scmp.ne.s32.totalorder %s212, %s213
      %p225 = scmp.eq.s32.totalorder %s35, 1
      %p226 = por %p224, %p225
      %p228 = scmp.ne.s32.totalorder %s213, %s227
      %p229 = scmp.eq.s32.totalorder %s35, 0
      %p230 = por %p228, %p229
      %s232 = sadd.s32 %s231, 1
      %p235 = scmp.eq.s32.totalorder %s29, 1
      %p236 = scmp.ne.s32.totalorder %s231, %s233
      %p237 = scmp.eq.s32.totalorder %s29, 0
      %p238 = por %p236, %p237
      %p239 = scmp.ne.s32.totalorder %s231, %s233
      %p240 = scmp.eq.s32.totalorder %s34, 1
      %p241 = por %p239, %p240
      %p242 = scmp.ne.s32.totalorder %s233, %s234
      %p243 = scmp.eq.s32.totalorder %s34, 0
      %p244 = por %p242, %p243
      %p245 = scmp.ne.s32.totalorder %s233, %s234
      %p246 = scmp.eq.s32.totalorder %s35, 1
      %p247 = por %p245, %p246
      %p249 = scmp.ne.s32.totalorder %s234, %s248
      %p250 = scmp.eq.s32.totalorder %s35, 0
      %p251 = por %p249, %p250
      %s253 = sadd.s32 %s252, 1
      %p256 = scmp.eq.s32.totalorder %s29, 1
      %p257 = scmp.ne.s32.totalorder %s252, %s254
      %p258 = scmp.eq.s32.totalorder %s29, 0
      %p259 = por %p257, %p258
      %p260 = scmp.ne.s32.totalorder %s252, %s254
      %p261 = scmp.eq.s32.totalorder %s34, 1
      %p262 = por %p260, %p261
      %p263 = scmp.ne.s32.totalorder %s254, %s255
      %p264 = scmp.eq.s32.totalorder %s34, 0
      %p265 = por %p263, %p264
      %p266 = scmp.ne.s32.totalorder %s254, %s255
      %p267 = scmp.eq.s32.totalorder %s35, 1
      %p268 = por %p266, %p267
      %p270 = scmp.ne.s32.totalorder %s255, %s269
      %p271 = scmp.eq.s32.totalorder %s35, 0
      %p272 = por %p270, %p271
      %s274 = sadd.s32 %s273, 1
      %p277 = scmp.eq.s32.totalorder %s29, 1
      %p278 = scmp.ne.s32.totalorder %s273, %s275
      %p279 = scmp.eq.s32.totalorder %s29, 0
      %p280 = por %p278, %p279
      %p281 = scmp.ne.s32.totalorder %s273, %s275
      %p282 = scmp.eq.s32.totalorder %s34, 1
      %p283 = por %p281, %p282
      %p284 = scmp.ne.s32.totalorder %s275, %s276
      %p285 = scmp.eq.s32.totalorder %s34, 0
      %p286 = por %p284, %p285
      %p287 = scmp.ne.s32.totalorder %s275, %s276
      %p288 = scmp.eq.s32.totalorder %s35, 1
      %p289 = por %p287, %p288
      %p291 = scmp.ne.s32.totalorder %s276, %s290
      %p292 = scmp.eq.s32.totalorder %s35, 0
      %p293 = por %p291, %p292
      %s295 = sadd.s32 %s294, 1
      %p298 = scmp.eq.s32.totalorder %s29, 1
      %p299 = scmp.ne.s32.totalorder %s294, %s296
      %p300 = scmp.eq.s32.totalorder %s29, 0
      %p301 = por %p299, %p300
      %p302 = scmp.ne.s32.totalorder %s294, %s296
      %p303 = scmp.eq.s32.totalorder %s34, 1
      %p304 = por %p302, %p303
      %p305 = scmp.ne.s32.totalorder %s296, %s297
      %p306 = scmp.eq.s32.totalorder %s34, 0
      %p307 = por %p305, %p306
      %p308 = scmp.ne.s32.totalorder %s296, %s297
      %p309 = scmp.eq.s32.totalorder %s35, 1
      %p310 = por %p308, %p309
      %p312 = scmp.ne.s32.totalorder %s297, %s311
      %p313 = scmp.eq.s32.totalorder %s35, 0
      %p314 = por %p312, %p313
      %s316 = sadd.s32 %s315, 1
      %p319 = scmp.eq.s32.totalorder %s29, 1
      %p320 = scmp.ne.s32.totalorder %s315, %s317
      %p321 = scmp.eq.s32.totalorder %s29, 0
      %p322 = por %p320, %p321
      %p323 = scmp.ne.s32.totalorder %s315, %s317
      %p324 = scmp.eq.s32.totalorder %s34, 1
      %p325 = por %p323, %p324
      %p326 = scmp.ne.s32.totalorder %s317, %s318
      %p327 = scmp.eq.s32.totalorder %s34, 0
      %p328 = por %p326, %p327
      %p329 = scmp.ne.s32.totalorder %s317, %s318
      %p330 = scmp.eq.s32.totalorder %s35, 1
      %p331 = por %p329, %p330
      %p333 = scmp.ne.s32.totalorder %s318, %s332
      %p334 = scmp.eq.s32.totalorder %s35, 0
      %p335 = por %p333, %p334
      %s337 = sadd.s32 %s336, 1
      %p340 = scmp.eq.s32.totalorder %s29, 1
      %p341 = scmp.ne.s32.totalorder %s336, %s338
      %p342 = scmp.eq.s32.totalorder %s29, 0
      %p343 = por %p341, %p342
      %p344 = scmp.ne.s32.totalorder %s336, %s338
      %p345 = scmp.eq.s32.totalorder %s34, 1
      %p346 = por %p344, %p345
      %p347 = scmp.ne.s32.totalorder %s338, %s339
      %p348 = scmp.eq.s32.totalorder %s34, 0
      %p349 = por %p347, %p348
      %p350 = scmp.ne.s32.totalorder %s338, %s339
      %p351 = scmp.eq.s32.totalorder %s35, 1
      %p352 = por %p350, %p351
      %p354 = scmp.ne.s32.totalorder %s339, %s353
      %p355 = scmp.eq.s32.totalorder %s35, 0
      %p356 = por %p354, %p355
      %s358 = sadd.s32 %s357, 1
      %p361 = scmp.eq.s32.totalorder %s29, 1
      %p362 = scmp.ne.s32.totalorder %s357, %s359
      %p363 = scmp.eq.s32.totalorder %s29, 0
      %p364 = por %p362, %p363
      %p365 = scmp.ne.s32.totalorder %s357, %s359
      %p366 = scmp.eq.s32.totalorder %s34, 1
      %p367 = por %p365, %p366
      %p368 = scmp.ne.s32.totalorder %s359, %s360
      %p369 = scmp.eq.s32.totalorder %s34, 0
      %p370 = por %p368, %p369
      %p371 = scmp.ne.s32.totalorder %s359, %s360
      %p372 = scmp.eq.s32.totalorder %s35, 1
      %p373 = por %p371, %p372
      %p375 = scmp.ne.s32.totalorder %s360, %s374
      %p376 = scmp.eq.s32.totalorder %s35, 0
      %p377 = por %p375, %p376
      %s379 = sadd.s32 %s378, 1
      %p382 = scmp.eq.s32.totalorder %s29, 1
      %p383 = scmp.ne.s32.totalorder %s378, %s380
      %p384 = scmp.eq.s32.totalorder %s29, 0
      %p385 = por %p383, %p384
      %p386 = scmp.ne.s32.totalorder %s378, %s380
      %p387 = scmp.eq.s32.totalorder %s34, 1
      %p388 = por %p386, %p387
      %p389 = scmp.ne.s32.totalorder %s380, %s381
      %p390 = scmp.eq.s32.totalorder %s34, 0
      %p391 = por %p389, %p390
      %p392 = scmp.ne.s32.totalorder %s380, %s381
      %p393 = scmp.eq.s32.totalorder %s35, 1
      %p394 = por %p392, %p393
      %p396 = scmp.ne.s32.totalorder %s381, %s395
      %p397 = scmp.eq.s32.totalorder %s35, 0
      %p398 = por %p396, %p397
      %s399 = ssub.s32 %s29, %s36
      %p400 = scmp.eq.s32.totalorder %s399, 0
      %s402 = sadd.s32 %s401, 1
      %s403 = scalar_select %p400, %s401, %s402
      %p406 = pneg %p400
      %p407 = scmp.eq.s32.totalorder %s29, 1
      %p408 = por %p406, %p407
      %p409 = scmp.ne.s32.totalorder %s401, %s404
      %p410 = scmp.eq.s32.totalorder %s29, 0
      %p411 = por %p409, %p410
      %p412 = scmp.ne.s32.totalorder %s401, %s404
      %p413 = scmp.eq.s32.totalorder %s34, 1
      %p414 = por %p412, %p413
      %p415 = scmp.ne.s32.totalorder %s404, %s405
      %p416 = scmp.eq.s32.totalorder %s34, 0
      %p417 = por %p415, %p416
      %p418 = scmp.ne.s32.totalorder %s404, %s405
      %p419 = scmp.eq.s32.totalorder %s35, 1
      %p420 = por %p418, %p419
      %p422 = scmp.ne.s32.totalorder %s405, %s421
      %p423 = scmp.eq.s32.totalorder %s35, 0
      %p424 = por %p422, %p423
      %p425 = scmp.le.s32.totalorder 1, %s29
      %p426 = scmp.lt.s32.totalorder %s29, 3
      %p427 = pnand %p425, %p426
      %p428 = pneg %p427
      // Predicated region
      $region9: #{vgg_forward.1} parent=5 // pred_check
        _
      $region10: #{vgg_forward.1} parent=5 // pred_check_branch
        %430 = sbr.rel (%p427) target = $region12
      $region11: #{vgg_forward.1} parent=5 // pred_region
        %s431 = ssub.s32 %s29, 1
        // Predicated region
        $region13: #{vgg_forward.1} parent=11 // pred_check
          %p432 = pneg %p76
        $region14: #{vgg_forward.1} parent=11 // pred_check_branch
          %434 = sbr.rel (%p432) target = $region16
        $region15: #{vgg_forward.1} parent=11 // pred_region
          %436 = vsyncadd [#allocation3], 0
          %s437 = sshll.u32 %s1, 4
          %s438 = int_to_ptr.hbm [resolvable:$true] %s437
          %s439 = sshll.u32 [#allocation2], 4
          %s440 = int_to_ptr.vmem [resolvable:$true] %s439
          %445 = dma.hbm_to_vmem [thread:$0]  %s438, 1536, %s440, [#allocation3], 192, 192, 12
        $region16: #{vgg_forward.1} parent=11 // pred_fallthru
          _
        // Predicated region
        $region17: #{vgg_forward.1} parent=11 // pred_check
          %p446 = pneg %p97
        $region18: #{vgg_forward.1} parent=11 // pred_check_branch
          %448 = sbr.rel (%p446) target = $region20
        $region19: #{vgg_forward.1} parent=11 // pred_region
          _
        $region20: #{vgg_forward.1} parent=11 // pred_fallthru
          _
        // Predicated region
        $region21: #{vgg_forward.1} parent=11 // pred_check
          %p449 = pneg %p118
        $region22: #{vgg_forward.1} parent=11 // pred_check_branch
          %451 = sbr.rel (%p449) target = $region24
        $region23: #{vgg_forward.1} parent=11 // pred_region
          %453 = vsyncadd [#allocation6], 0
          %s454 = sshll.u32 %s3, 4
          %s455 = int_to_ptr.hbm [resolvable:$true] %s454
          %s456 = sshll.u32 [#allocation5], 4
          %s457 = int_to_ptr.vmem [resolvable:$true] %s456
          %462 = dma.hbm_to_vmem [thread:$0]  %s455, 1024, %s457, [#allocation6], 64, 64, 4
        $region24: #{vgg_forward.1} parent=11 // pred_fallthru
          _
        // Predicated region
        $region25: #{vgg_forward.1} parent=11 // pred_check
          %p463 = pneg %p139
        $region26: #{vgg_forward.1} parent=11 // pred_check_branch
          %465 = sbr.rel (%p463) target = $region28
        $region27: #{vgg_forward.1} parent=11 // pred_region
          _
        $region28: #{vgg_forward.1} parent=11 // pred_fallthru
          _
        // Predicated region
        $region29: #{vgg_forward.1} parent=11 // pred_check
          %p466 = pneg %p160
        $region30: #{vgg_forward.1} parent=11 // pred_check_branch
          %468 = sbr.rel (%p466) target = $region32
        $region31: #{vgg_forward.1} parent=11 // pred_region
          %470 = vsyncadd [#allocation6], 0
          %s471 = sshll.u32 %s5, 4
          %s472 = int_to_ptr.hbm [resolvable:$true] %s471
          %s473 = sshll.u32 [#allocation7], 4
          %s474 = int_to_ptr.vmem [resolvable:$true] %s473
          %479 = dma.hbm_to_vmem [thread:$0]  %s472, 1536, %s474, [#allocation6], 192, 192, 12
        $region32: #{vgg_forward.1} parent=11 // pred_fallthru
          _
        // Predicated region
        $region33: #{vgg_forward.1} parent=11 // pred_check
          %p480 = pneg %p181
        $region34: #{vgg_forward.1} parent=11 // pred_check_branch
          %482 = sbr.rel (%p480) target = $region36
        $region35: #{vgg_forward.1} parent=11 // pred_region
          _
        $region36: #{vgg_forward.1} parent=11 // pred_fallthru
          _
        // Predicated region
        $region37: #{vgg_forward.1} parent=11 // pred_check
          %p483 = pneg %p202
        $region38: #{vgg_forward.1} parent=11 // pred_check_branch
          %485 = sbr.rel (%p483) target = $region40
        $region39: #{vgg_forward.1} parent=11 // pred_region
          _
        $region40: #{vgg_forward.1} parent=11 // pred_fallthru
          _
        // Predicated region
        $region41: #{vgg_forward.1} parent=11 // pred_check
          %p486 = pneg %p223
        $region42: #{vgg_forward.1} parent=11 // pred_check_branch
          %488 = sbr.rel (%p486) target = $region44
        $region43: #{vgg_forward.1} parent=11 // pred_region
          _
        $region44: #{vgg_forward.1} parent=11 // pred_fallthru
          _
        // Predicated region
        $region45: #{vgg_forward.1} parent=11 // pred_check
          %p489 = pneg %p244
        $region46: #{vgg_forward.1} parent=11 // pred_check_branch
          %491 = sbr.rel (%p489) target = $region48
        $region47: #{vgg_forward.1} parent=11 // pred_region
          _
        $region48: #{vgg_forward.1} parent=11 // pred_fallthru
          _
        // Predicated region
        $region49: #{vgg_forward.1} parent=11 // pred_check
          %p492 = pneg %p265
        $region50: #{vgg_forward.1} parent=11 // pred_check_branch
          %494 = sbr.rel (%p492) target = $region52
        $region51: #{vgg_forward.1} parent=11 // pred_region
          _
        $region52: #{vgg_forward.1} parent=11 // pred_fallthru
          _
        // Predicated region
        $region53: #{vgg_forward.1} parent=11 // pred_check
          %p495 = pneg %p286
        $region54: #{vgg_forward.1} parent=11 // pred_check_branch
          %497 = sbr.rel (%p495) target = $region56
        $region55: #{vgg_forward.1} parent=11 // pred_region
          _
        $region56: #{vgg_forward.1} parent=11 // pred_fallthru
          _
        // Predicated region
        $region57: #{vgg_forward.1} parent=11 // pred_check
          %p498 = pneg %p307
        $region58: #{vgg_forward.1} parent=11 // pred_check_branch
          %500 = sbr.rel (%p498) target = $region60
        $region59: #{vgg_forward.1} parent=11 // pred_region
          _
        $region60: #{vgg_forward.1} parent=11 // pred_fallthru
          _
        // Predicated region
        $region61: #{vgg_forward.1} parent=11 // pred_check
          %p501 = pneg %p328
        $region62: #{vgg_forward.1} parent=11 // pred_check_branch
          %503 = sbr.rel (%p501) target = $region64
        $region63: #{vgg_forward.1} parent=11 // pred_region
          %505 = vsyncadd [#allocation9], 0
          %s506 = sshll.u32 %s13, 4
          %s507 = int_to_ptr.hbm [resolvable:$true] %s506
          %s508 = sshll.u32 [#allocation8], 4
          %s509 = int_to_ptr.vmem [resolvable:$true] %s508
          %514 = dma.hbm_to_vmem [thread:$0]  %s507, 512, %s509, [#allocation9], 64, 64, 4
        $region64: #{vgg_forward.1} parent=11 // pred_fallthru
          _
        // Predicated region
        $region65: #{vgg_forward.1} parent=11 // pred_check
          %p515 = pneg %p349
        $region66: #{vgg_forward.1} parent=11 // pred_check_branch
          %517 = sbr.rel (%p515) target = $region68
        $region67: #{vgg_forward.1} parent=11 // pred_region
          _
        $region68: #{vgg_forward.1} parent=11 // pred_fallthru
          _
        // Predicated region
        $region69: #{vgg_forward.1} parent=11 // pred_check
          %p518 = pneg %p370
        $region70: #{vgg_forward.1} parent=11 // pred_check_branch
          %520 = sbr.rel (%p518) target = $region72
        $region71: #{vgg_forward.1} parent=11 // pred_region
          %522 = vsyncadd [#allocation9], 0
          %s523 = sshll.u32 %s15, 4
          %s524 = int_to_ptr.hbm [resolvable:$true] %s523
          %s525 = sshll.u32 [#allocation10], 4
          %s526 = int_to_ptr.vmem [resolvable:$true] %s525
          %531 = dma.hbm_to_vmem [thread:$0]  %s524, 512, %s526, [#allocation9], 64, 64, 4
        $region72: #{vgg_forward.1} parent=11 // pred_fallthru
          _
        // Predicated region
        $region73: #{vgg_forward.1} parent=11 // pred_check
          %p532 = pneg %p391
        $region74: #{vgg_forward.1} parent=11 // pred_check_branch
          %534 = sbr.rel (%p532) target = $region76
        $region75: #{vgg_forward.1} parent=11 // pred_region
          _
        $region76: #{vgg_forward.1} parent=11 // pred_fallthru
          _
      $region12: #{vgg_forward.1} parent=5 // pred_fallthru
        _
      %p535 = scmp.lt.s32.totalorder %s29, 2
      // Predicated region
      $region77: #{vgg_forward.1} parent=5 // pred_check
        %p536 = pneg %p535
      $region78: #{vgg_forward.1} parent=5 // pred_check_branch
        %538 = sbr.rel (%p536) target = $region80
      $region79: #{vgg_forward.1} parent=5 // pred_region
        // Predicated region
        $region81: #{vgg_forward.1} parent=79 // pred_check
          %p539 = pneg %p49
        $region82: #{vgg_forward.1} parent=79 // pred_check_branch
          %541 = sbr.rel (%p539) target = $region84
        $region83: #{vgg_forward.1} parent=79 // pred_region
          %p542 = scmp.lt.s32.totalorder %s29, 1
          %s543 = scalar_select %p542, %s29, 1
          %s544 = smul.addr %s543, 2
          %s545 = smul.addr %s544, 4
          %s546 = scalar_lea.vmem %s0, %s545
        $region84: #{vgg_forward.1} parent=79 // pred_fallthru
          _
      $region80: #{vgg_forward.1} parent=5 // pred_fallthru
        _
      %p547 = scmp.le.s32.totalorder 1, %s29
      %p548 = scmp.lt.s32.totalorder %s29, 3
      %p549 = pnand %p547, %p548
      %p550 = pneg %p549
      // Predicated region
      $region85: #{vgg_forward.1} parent=5 // pred_check
        _
      $region86: #{vgg_forward.1} parent=5 // pred_check_branch
        %552 = sbr.rel (%p549) target = $region88
      $region87: #{vgg_forward.1} parent=5 // pred_region
        %s553 = ssub.s32 %s29, 1
        // Predicated region
        $region89: #{vgg_forward.1} parent=87 // pred_check
          %p554 = pneg %p76
        $region90: #{vgg_forward.1} parent=87 // pred_check_branch
          %556 = sbr.rel (%p554) target = $region92
        $region91: #{vgg_forward.1} parent=87 // pred_region
          %558 = dma.done [#allocation3], 1536
        $region92: #{vgg_forward.1} parent=87 // pred_fallthru
          _
        // Predicated region
        $region93: #{vgg_forward.1} parent=87 // pred_check
          %p559 = pneg %p118
        $region94: #{vgg_forward.1} parent=87 // pred_check_branch
          %561 = sbr.rel (%p559) target = $region96
        $region95: #{vgg_forward.1} parent=87 // pred_region
          %563 = dma.done [#allocation6], 1024
        $region96: #{vgg_forward.1} parent=87 // pred_fallthru
          _
        // Predicated region
        $region97: #{vgg_forward.1} parent=87 // pred_check
          %p564 = pneg %p160
        $region98: #{vgg_forward.1} parent=87 // pred_check_branch
          %566 = sbr.rel (%p564) target = $region100
        $region99: #{vgg_forward.1} parent=87 // pred_region
          %568 = dma.done [#allocation6], 1536
        $region100: #{vgg_forward.1} parent=87 // pred_fallthru
          _
        // Predicated region
        $region101: #{vgg_forward.1} parent=87 // pred_check
          %p569 = pneg %p328
        $region102: #{vgg_forward.1} parent=87 // pred_check_branch
          %571 = sbr.rel (%p569) target = $region104
        $region103: #{vgg_forward.1} parent=87 // pred_region
          %573 = dma.done [#allocation9], 512
        $region104: #{vgg_forward.1} parent=87 // pred_fallthru
          _
        // Predicated region
        $region105: #{vgg_forward.1} parent=87 // pred_check
          %p574 = pneg %p370
        $region106: #{vgg_forward.1} parent=87 // pred_check_branch
          %576 = sbr.rel (%p574) target = $region108
        $region107: #{vgg_forward.1} parent=87 // pred_region
          %578 = dma.done [#allocation9], 512
        $region108: #{vgg_forward.1} parent=87 // pred_fallthru
          _
        %p579 = scmp.lt.s32.totalorder %s34, 1
        %s580 = scalar_select %p579, %s34, 1
        %s581 = smul.addr %s580, 2
        %s582 = smul.addr %s581, 4
        %s583 = scalar_lea.vmem %s0, %s582
        %p584 = pneg %p55
        %p585 = pneg %p52
        %p586 = pneg %p76
        %p587 = pneg %p73
        %p588 = pneg %p97
        %p589 = pneg %p94
        %p590 = pneg %p118
        %p591 = pneg %p115
        %p592 = pneg %p139
        %p593 = pneg %p136
        %p594 = pneg %p160
        %p595 = pneg %p157
        %p596 = pneg %p181
        %p597 = pneg %p178
        %p598 = pneg %p202
        %p599 = pneg %p199
        %p600 = pneg %p223
        %p601 = pneg %p220
        %p602 = pneg %p244
        %p603 = pneg %p241
        %p604 = pneg %p265
        %p605 = pneg %p262
        %p606 = pneg %p286
        %p607 = pneg %p283
        %p608 = pneg %p307
        %p609 = pneg %p304
        %p610 = pneg %p328
        %p611 = pneg %p325
        %p612 = pneg %p349
        %p613 = pneg %p346
        %p614 = pneg %p370
        %p615 = pneg %p367
        %p616 = pneg %p391
        %p617 = pneg %p388
        %p618 = pneg %p417
        %p619 = pneg %p414
        %s620 = sand.u32 %s404, 1
        %s621 = scalar_lea.sflag [#allocation4], %s620
        %s622 = sand.u32 %s404, 1
        %s623 = scalar_lea.vmem [#allocation11], %s622
        %p624 = scmp.lt.s32.totalorder %s34, 1
        %s625 = scalar_select %p624, %s34, 1
        %s626 = smul.addr %s625, 2
        %s627 = smul.addr %s626, 4
        %s628 = scalar_lea.vmem %s0, %s627
        %v630 = vld [vmem:[%s628] sm:$0xf]
        %v631 = vld [vmem:[%s628 + $0x4] sm:$0xf]
        %v632 = vlaneseq
        %v633 = vshrl.u32 %v632, 7
        %v634 = vadd.s32 %v633, 8
        %vm635 = vcmp.ne.s32.totalorder %v633, 0
        %vm636 = vcmp.ne.s32.totalorder %v634, 0
        %v637 = vsel %vm635, 1, 0
        %v638 = vsel %vm636, 1, 0
        %v639 = vcvt.s32.f32 %v637
        %v640 = vcvt.s32.f32 %v638
        %vm641 = vcmp.ne.s32.totalorder %v633, 15
        %vm642 = vcmp.ne.s32.totalorder %v634, 15
        %v643 = vsel %vm641, 1, 0
        %v644 = vsel %vm642, 1, 0
        %v645 = vcvt.s32.f32 %v643
        %v646 = vcvt.s32.f32 %v644
        %vm647 = vcmp.ne.s32.totalorder %v633, 7
        %v648 = vsel %vm647, 1, 0
        %v649 = vcvt.s32.f32 %v648
        %v650 = vld [vmem:[#allocation2] sm:$0xff]
        %v651 = vld [vmem:[#allocation2 + $0x8] sm:$0xf]
        %v652 = vld [vmem:[#allocation2 + $0xc] sm:$0xff]
        %v653 = vld [vmem:[#allocation2 + $0x14] sm:$0xf]
        %v654 = vld [vmem:[#allocation2 + $0x18] sm:$0xff]
        %v655 = vld [vmem:[#allocation2 + $0x20] sm:$0xf]
        %v656 = vld [vmem:[#allocation2 + $0x24] sm:$0xff]
        %v657 = vld [vmem:[#allocation2 + $0x2c] sm:$0xf]
        %v658 = vld [vmem:[#allocation2 + $0x30] sm:$0xff]
        %v659 = vld [vmem:[#allocation2 + $0x38] sm:$0xf]
        %v660 = vld [vmem:[#allocation2 + $0x3c] sm:$0xff]
        %v661 = vld [vmem:[#allocation2 + $0x44] sm:$0xf]
        %v662 = vld [vmem:[#allocation2 + $0x48] sm:$0xff]
        %v663 = vld [vmem:[#allocation2 + $0x50] sm:$0xf]
        %v664 = vld [vmem:[#allocation2 + $0x54] sm:$0xff]
        %v665 = vld [vmem:[#allocation2 + $0x5c] sm:$0xf]
        %v666 = vld [vmem:[%s2] sm:$0x1]
        %v669 = vunpack.c.l.b16 %v630
        %v670 = vunpack.c.l.b16 %v631
        %v671 = vpack.c.b16 %v670, %v669
        %v688 = vunpack.c.l.b16 %v650
        %v689 = vunpack.c.h.b16 %v650
        %v690 = vunpack.c.l.b16 %v651
        %v691 = vunpack.c.l.b16 %v652
        %v692 = vunpack.c.h.b16 %v652
        %v693 = vunpack.c.l.b16 %v653
        %v694 = vunpack.c.l.b16 %v654
        %v695 = vunpack.c.h.b16 %v654
        %v696 = vunpack.c.l.b16 %v655
        %v697 = vunpack.c.l.b16 %v656
        %v698 = vunpack.c.h.b16 %v656
        %v699 = vunpack.c.l.b16 %v657
        %v700 = vunpack.c.l.b16 %v658
        %v701 = vunpack.c.h.b16 %v658
        %v702 = vunpack.c.l.b16 %v659
        %v703 = vunpack.c.l.b16 %v660
        %v704 = vunpack.c.h.b16 %v660
        %v705 = vunpack.c.l.b16 %v661
        %v706 = vunpack.c.l.b16 %v662
        %v707 = vunpack.c.h.b16 %v662
        %v708 = vunpack.c.l.b16 %v663
        %v709 = vunpack.c.l.b16 %v664
        %v710 = vunpack.c.h.b16 %v664
        %v711 = vunpack.c.l.b16 %v665
        %v712 = vpack.c.b16 %v691, %v688
        %v713 = vpack.c.b16 %v692, %v689
        %v714 = vpack.c.b16 %v693, %v690
        %v715 = vpack.c.b16 %v697, %v694
        %v716 = vpack.c.b16 %v698, %v695
        %v717 = vpack.c.b16 %v699, %v696
        %v718 = vpack.c.b16 %v703, %v700
        %v719 = vpack.c.b16 %v704, %v701
        %v720 = vpack.c.b16 %v705, %v702
        %v721 = vpack.c.b16 %v709, %v706
        %v722 = vpack.c.b16 %v710, %v707
        %v723 = vpack.c.b16 %v711, %v708
        %vm736 = vcmask 523264
        %v738 = vsel %vm736, %v671, 0
        %740 = vmatpush.bf16.msra.mxu0 0
        %741 = vmatpush.bf16.msra.mxu0 0
        %742 = vmatpush.bf16.msra.mxu0 0
        %743 = vmatpush.bf16.msra.mxu0 0
        %744 = vmatpush.bf16.msra.mxu0 %v721
        %745 = vmatpush.bf16.msra.mxu0 %v718
        %746 = vmatpush.bf16.msra.mxu0 %v715
        %747 = vmatpush.bf16.msra.mxu0 %v712
        %748 = vmatmul.bf16.gmra.mxu0 %v738
        %v749 = vpop.f32.mrf.mxu0
        %v750 = vadd.f32 0.0, %v749
        %v751 = vpop.f32.mrf.mxu0
        %v752 = vadd.f32 0.0, %v751
        %753 = vdwg.mxu0
        %754 = vmatpush.bf16.msra.mxu0 0
        %755 = vmatpush.bf16.msra.mxu0 0
        %756 = vmatpush.bf16.msra.mxu0 0
        %757 = vmatpush.bf16.msra.mxu0 0
        %758 = vmatpush.bf16.msra.mxu0 %v722
        %759 = vmatpush.bf16.msra.mxu0 %v719
        %760 = vmatpush.bf16.msra.mxu0 %v716
        %761 = vmatpush.bf16.msra.mxu0 %v713
        %762 = vmatmul.bf16.gmra.mxu0 %v738
        %v763 = vpop.f32.mrf.mxu0
        %v764 = vadd.f32 0.0, %v763
        %v765 = vpop.f32.mrf.mxu0
        %v766 = vadd.f32 0.0, %v765
        %767 = vdwg.mxu0
        %768 = vmatpush.bf16.msra.mxu0 0
        %769 = vmatpush.bf16.msra.mxu0 0
        %770 = vmatpush.bf16.msra.mxu0 0
        %771 = vmatpush.bf16.msra.mxu0 0
        %772 = vmatpush.bf16.msra.mxu0 %v723
        %773 = vmatpush.bf16.msra.mxu0 %v720
        %774 = vmatpush.bf16.msra.mxu0 %v717
        %775 = vmatpush.bf16.msra.mxu0 %v714
        %776 = vmatmul.bf16.gmra.mxu0 %v738
        %v777 = vpop.f32.mrf.mxu0
        %v778 = vadd.f32 0.0, %v777
        %v779 = vpop.f32.mrf.mxu0
        %v780 = vadd.f32 0.0, %v779
        %781 = vdwg.mxu0
        %v782 = vrot.slane %v750, 7
        %v783 = vrot.slane %v752, 7
        %vm784 = vcmp.lt.s32.totalorder %v633, 1
        %v785 = vsel %vm784, %v782, %v783
        %v786 = vsel %vm784, %v783, %v782
        %v787 = vmul.f32 %v639, %v786
        %v788 = vmul.f32 %v640, %v785
        %v789 = vadd.f32 %v764, %v787
        %v790 = vadd.f32 %v766, %v788
        %v791 = vrot.slane %v778, 1
        %v792 = vrot.slane %v780, 1
        %vm793 = vcmp.lt.s32.totalorder %v633, 7
        %v794 = vsel %vm793, %v791, %v792
        %v795 = vsel %vm793, %v792, %v791
        %v796 = vmul.f32 %v645, %v794
        %v797 = vmul.f32 %v646, %v795
        %v798 = vadd.f32 %v789, %v796
        %v799 = vadd.f32 %v790, %v797
        %v801 = vperm.slane %v666, 0
        %v803 = vadd.f32 %v798, %v801
        %v804 = vadd.f32 %v799, %v801
        %v805 = vmax.f32 %v803, 0.0
        %v806 = vmax.f32 %v804, 0.0
        %v807 = vld [vmem:[#allocation5] sm:$0xf]
        %v808 = vld [vmem:[#allocation5 + $0x4] sm:$0xf]
        %v809 = vld [vmem:[#allocation5 + $0x8] sm:$0xf]
        %v810 = vld [vmem:[#allocation5 + $0xc] sm:$0xf]
        %v811 = vld [vmem:[#allocation5 + $0x10] sm:$0xf]
        %v812 = vld [vmem:[#allocation5 + $0x14] sm:$0xf]
        %v813 = vld [vmem:[#allocation5 + $0x18] sm:$0xf]
        %v814 = vld [vmem:[#allocation5 + $0x1c] sm:$0xf]
        %v815 = vld [vmem:[#allocation5 + $0x20] sm:$0xf]
        %v816 = vld [vmem:[#allocation5 + $0x24] sm:$0xf]
        %v817 = vld [vmem:[#allocation5 + $0x28] sm:$0xf]
        %v818 = vld [vmem:[#allocation5 + $0x2c] sm:$0xf]
        %v819 = vld [vmem:[#allocation5 + $0x30] sm:$0xf]
        %v820 = vld [vmem:[#allocation5 + $0x34] sm:$0xf]
        %v821 = vld [vmem:[#allocation5 + $0x38] sm:$0xf]
        %v822 = vld [vmem:[#allocation5 + $0x3c] sm:$0xf]
        %v823 = vld [vmem:[%s4] sm:$0xf]
        %824 = vrot.lane.b32.xlu0 %v805, 120
        %v825 = vpop.permute.xlu0 %824
        %826 = vrot.lane.b32.xlu0 %v806, 120
        %v827 = vpop.permute.xlu0 %826
        %v828 = vmax.f32 %v805, %v825
        %v829 = vmax.f32 %v806, %v827
        %v830 = vpack.c.bf16 %v829, %v828
        %v847 = vunpack.c.l.b16 %v807
        %v848 = vunpack.c.l.b16 %v808
        %v849 = vunpack.c.l.b16 %v809
        %v850 = vunpack.c.l.b16 %v810
        %v851 = vunpack.c.l.b16 %v811
        %v852 = vunpack.c.l.b16 %v812
        %v853 = vunpack.c.l.b16 %v813
        %v854 = vunpack.c.l.b16 %v814
        %v855 = vunpack.c.l.b16 %v815
        %v856 = vunpack.c.l.b16 %v816
        %v857 = vunpack.c.l.b16 %v817
        %v858 = vunpack.c.l.b16 %v818
        %v859 = vunpack.c.l.b16 %v819
        %v860 = vunpack.c.l.b16 %v820
        %v861 = vunpack.c.l.b16 %v821
        %v862 = vunpack.c.l.b16 %v822
        %v863 = vpack.c.b16 %v848, %v847
        %v864 = vpack.c.b16 %v850, %v849
        %v865 = vpack.c.b16 %v852, %v851
        %v866 = vpack.c.b16 %v854, %v853
        %v867 = vpack.c.b16 %v856, %v855
        %v868 = vpack.c.b16 %v858, %v857
        %v869 = vpack.c.b16 %v860, %v859
        %v870 = vpack.c.b16 %v862, %v861
        %879 = vmatpush.bf16.msra.mxu0 %v870
        %880 = vmatpush.bf16.msra.mxu0 %v869
        %881 = vmatpush.bf16.msra.mxu0 %v868
        %882 = vmatpush.bf16.msra.mxu0 %v867
        %883 = vmatpush.bf16.msra.mxu0 %v866
        %884 = vmatpush.bf16.msra.mxu0 %v865
        %885 = vmatpush.bf16.msra.mxu0 %v864
        %886 = vmatpush.bf16.msra.mxu0 %v863
        %887 = vmatmul.bf16.gmra.mxu0 %v830
        %v888 = vpop.f32.mrf.mxu0
        %v889 = vadd.f32 0.0, %v888
        %v890 = vpop.f32.mrf.mxu0
        %v891 = vadd.f32 0.0, %v890
        %892 = vdwg.mxu0
        %v893 = vrot.slane %v889, 1
        %v894 = vrot.slane %v891, 1
        %v895 = vsel %vm793, %v893, %v894
        %v896 = vsel %vm793, %v894, %v893
        %v897 = vmax.f32 %v889, %v895
        %v898 = vmax.f32 %v891, %v896
        %v899 = vpack.c.bf16 %v898, %v897
        %vm900 = vcmask 130048
        %v902 = vsel %vm900, %v823, 0
        %904 = vmatpush.bf16.msra.mxu0 0
        %905 = vmatpush.bf16.msra.mxu0 0
        %906 = vmatpush.bf16.msra.mxu0 0
        %907 = vmatpush.bf16.msra.mxu0 0
        %908 = vmatpush.bf16.msra.mxu0 0
        %909 = vmatpush.bf16.msra.mxu0 0
        %910 = vmatpush.bf16.msra.mxu0 0
        %911 = vmatpush.bf16.msra.mxu0 %v899
        %912 = vmatmul.bf16.gmra.mxu0 %v902
        %v913 = vpop.f32.mrf.mxu0
        %v914 = vadd.f32 0.0, %v913
        %v915 = vpop.f32.mrf.mxu0
        %916 = vdwg.mxu0
        %v917 = vpack.c.bf16 %v914, %v914
        %v918 = vld [vmem:[#allocation7] sm:$0xff]
        %v919 = vld [vmem:[#allocation7 + $0x8] sm:$0xf]
        %v920 = vld [vmem:[#allocation7 + $0xc] sm:$0xff]
        %v921 = vld [vmem:[#allocation7 + $0x14] sm:$0xf]
        %v922 = vld [vmem:[#allocation7 + $0x18] sm:$0xff]
        %v923 = vld [vmem:[#allocation7 + $0x20] sm:$0xf]
        %v924 = vld [vmem:[#allocation7 + $0x24] sm:$0xff]
        %v925 = vld [vmem:[#allocation7 + $0x2c] sm:$0xf]
        %v926 = vld [vmem:[#allocation7 + $0x30] sm:$0xff]
        %v927 = vld [vmem:[#allocation7 + $0x38] sm:$0xf]
        %v928 = vld [vmem:[#allocation7 + $0x3c] sm:$0xff]
        %v929 = vld [vmem:[#allocation7 + $0x44] sm:$0xf]
        %v930 = vld [vmem:[#allocation7 + $0x48] sm:$0xff]
        %v931 = vld [vmem:[#allocation7 + $0x50] sm:$0xf]
        %v932 = vld [vmem:[#allocation7 + $0x54] sm:$0xff]
        %v933 = vld [vmem:[#allocation7 + $0x5c] sm:$0xf]
        %v934 = vld [vmem:[%s6] sm:$0x1]
        %v951 = vunpack.c.l.b16 %v918
        %v952 = vunpack.c.h.b16 %v918
        %v953 = vunpack.c.l.b16 %v919
        %v954 = vunpack.c.l.b16 %v920
        %v955 = vunpack.c.h.b16 %v920
        %v956 = vunpack.c.l.b16 %v921
        %v957 = vunpack.c.l.b16 %v922
        %v958 = vunpack.c.h.b16 %v922
        %v959 = vunpack.c.l.b16 %v923
        %v960 = vunpack.c.l.b16 %v924
        %v961 = vunpack.c.h.b16 %v924
        %v962 = vunpack.c.l.b16 %v925
        %v963 = vunpack.c.l.b16 %v926
        %v964 = vunpack.c.h.b16 %v926
        %v965 = vunpack.c.l.b16 %v927
        %v966 = vunpack.c.l.b16 %v928
        %v967 = vunpack.c.h.b16 %v928
        %v968 = vunpack.c.l.b16 %v929
        %v969 = vunpack.c.l.b16 %v930
        %v970 = vunpack.c.h.b16 %v930
        %v971 = vunpack.c.l.b16 %v931
        %v972 = vunpack.c.l.b16 %v932
        %v973 = vunpack.c.h.b16 %v932
        %v974 = vunpack.c.l.b16 %v933
        %v975 = vpack.c.b16 %v954, %v951
        %v976 = vpack.c.b16 %v955, %v952
        %v977 = vpack.c.b16 %v956, %v953
        %v978 = vpack.c.b16 %v960, %v957
        %v979 = vpack.c.b16 %v961, %v958
        %v980 = vpack.c.b16 %v962, %v959
        %v981 = vpack.c.b16 %v966, %v963
        %v982 = vpack.c.b16 %v967, %v964
        %v983 = vpack.c.b16 %v968, %v965
        %v984 = vpack.c.b16 %v972, %v969
        %v985 = vpack.c.b16 %v973, %v970
        %v986 = vpack.c.b16 %v974, %v971
        %v1000 = vsel %vm736, %v917, 0
        %1002 = vmatpush.bf16.msra.mxu0 0
        %1003 = vmatpush.bf16.msra.mxu0 0
        %1004 = vmatpush.bf16.msra.mxu0 0
        %1005 = vmatpush.bf16.msra.mxu0 0
        %1006 = vmatpush.bf16.msra.mxu0 %v984
        %1007 = vmatpush.bf16.msra.mxu0 %v981
        %1008 = vmatpush.bf16.msra.mxu0 %v978
        %1009 = vmatpush.bf16.msra.mxu0 %v975
        %1010 = vmatmul.bf16.gmra.mxu0 %v1000
        %v1011 = vpop.f32.mrf.mxu0
        %v1012 = vadd.f32 0.0, %v1011
        %v1013 = vpop.f32.mrf.mxu0
        %1014 = vdwg.mxu0
        %1015 = vmatpush.bf16.msra.mxu0 0
        %1016 = vmatpush.bf16.msra.mxu0 0
        %1017 = vmatpush.bf16.msra.mxu0 0
        %1018 = vmatpush.bf16.msra.mxu0 0
        %1019 = vmatpush.bf16.msra.mxu0 %v985
        %1020 = vmatpush.bf16.msra.mxu0 %v982
        %1021 = vmatpush.bf16.msra.mxu0 %v979
        %1022 = vmatpush.bf16.msra.mxu0 %v976
        %1023 = vmatmul.bf16.gmra.mxu0 %v1000
        %v1024 = vpop.f32.mrf.mxu0
        %v1025 = vadd.f32 0.0, %v1024
        %v1026 = vpop.f32.mrf.mxu0
        %1027 = vdwg.mxu0
        %1028 = vmatpush.bf16.msra.mxu0 0
        %1029 = vmatpush.bf16.msra.mxu0 0
        %1030 = vmatpush.bf16.msra.mxu0 0
        %1031 = vmatpush.bf16.msra.mxu0 0
        %1032 = vmatpush.bf16.msra.mxu0 %v986
        %1033 = vmatpush.bf16.msra.mxu0 %v983
        %1034 = vmatpush.bf16.msra.mxu0 %v980
        %1035 = vmatpush.bf16.msra.mxu0 %v977
        %1036 = vmatmul.bf16.gmra.mxu0 %v1000
        %v1037 = vpop.f32.mrf.mxu0
        %v1038 = vadd.f32 0.0, %v1037
        %v1039 = vpop.f32.mrf.mxu0
        %1040 = vdwg.mxu0
        %v1041 = vrot.slane %v1012, 7
        %v1042 = vmul.f32 %v639, %v1041
        %v1043 = vadd.f32 %v1025, %v1042
        %v1044 = vrot.slane %v1038, 1
        %v1045 = vmul.f32 %v649, %v1044
        %v1046 = vadd.f32 %v1043, %v1045
        %v1048 = vperm.slane %v934, 0
        %v1050 = vadd.f32 %v1046, %v1048
        %v1051 = vmax.f32 %v1050, 0.0
        %v1052 = vpack.c.bf16 %v1051, %v1051
        %v1053 = vld [vmem:[%s7] sm:$0xff]
        %v1054 = vld [vmem:[%s7 + $0x8] sm:$0xf]
        %v1055 = vld [vmem:[%s7 + $0xc] sm:$0xff]
        %v1056 = vld [vmem:[%s7 + $0x14] sm:$0xf]
        %v1057 = vld [vmem:[%s7 + $0x18] sm:$0xff]
        %v1058 = vld [vmem:[%s7 + $0x20] sm:$0xf]
        %v1059 = vld [vmem:[%s7 + $0x24] sm:$0xff]
        %v1060 = vld [vmem:[%s7 + $0x2c] sm:$0xf]
        %v1061 = vld [vmem:[%s7 + $0x30] sm:$0xff]
        %v1062 = vld [vmem:[%s7 + $0x38] sm:$0xf]
        %v1063 = vld [vmem:[%s7 + $0x3c] sm:$0xff]
        %v1064 = vld [vmem:[%s7 + $0x44] sm:$0xf]
        %v1065 = vld [vmem:[%s7 + $0x48] sm:$0xff]
        %v1066 = vld [vmem:[%s7 + $0x50] sm:$0xf]
        %v1067 = vld [vmem:[%s7 + $0x54] sm:$0xff]
        %v1068 = vld [vmem:[%s7 + $0x5c] sm:$0xf]
        %v1069 = vld [vmem:[%s7 + $0x60] sm:$0xff]
        %v1070 = vld [vmem:[%s7 + $0x68] sm:$0xf]
        %v1071 = vld [vmem:[%s7 + $0x6c] sm:$0xff]
        %v1072 = vld [vmem:[%s7 + $0x74] sm:$0xf]
        %v1073 = vld [vmem:[%s7 + $0x78] sm:$0xff]
        %v1074 = vld [vmem:[%s7 + $0x80] sm:$0xf]
        %v1075 = vld [vmem:[%s7 + $0x84] sm:$0xff]
        %v1076 = vld [vmem:[%s7 + $0x8c] sm:$0xf]
        %v1077 = vld [vmem:[%s7 + $0x90] sm:$0xff]
        %v1078 = vld [vmem:[%s7 + $0x98] sm:$0xf]
        %v1079 = vld [vmem:[%s7 + $0x9c] sm:$0xff]
        %v1080 = vld [vmem:[%s7 + $0xa4] sm:$0xf]
        %v1081 = vld [vmem:[%s7 + $0xa8] sm:$0xff]
        %v1082 = vld [vmem:[%s7 + $0xb0] sm:$0xf]
        %v1083 = vld [vmem:[%s7 + $0xb4] sm:$0xff]
        %v1084 = vld [vmem:[%s7 + $0xbc] sm:$0xf]
        %v1085 = vld [vmem:[%s8] sm:$0x1]
        %v1118 = vunpack.c.l.b16 %v1053
        %v1119 = vunpack.c.h.b16 %v1053
        %v1120 = vunpack.c.l.b16 %v1054
        %v1121 = vunpack.c.l.b16 %v1055
        %v1122 = vunpack.c.h.b16 %v1055
        %v1123 = vunpack.c.l.b16 %v1056
        %v1124 = vunpack.c.l.b16 %v1057
        %v1125 = vunpack.c.h.b16 %v1057
        %v1126 = vunpack.c.l.b16 %v1058
        %v1127 = vunpack.c.l.b16 %v1059
        %v1128 = vunpack.c.h.b16 %v1059
        %v1129 = vunpack.c.l.b16 %v1060
        %v1130 = vunpack.c.l.b16 %v1061
        %v1131 = vunpack.c.h.b16 %v1061
        %v1132 = vunpack.c.l.b16 %v1062
        %v1133 = vunpack.c.l.b16 %v1063
        %v1134 = vunpack.c.h.b16 %v1063
        %v1135 = vunpack.c.l.b16 %v1064
        %v1136 = vunpack.c.l.b16 %v1065
        %v1137 = vunpack.c.h.b16 %v1065
        %v1138 = vunpack.c.l.b16 %v1066
        %v1139 = vunpack.c.l.b16 %v1067
        %v1140 = vunpack.c.h.b16 %v1067
        %v1141 = vunpack.c.l.b16 %v1068
        %v1142 = vunpack.c.l.b16 %v1069
        %v1143 = vunpack.c.h.b16 %v1069
        %v1144 = vunpack.c.l.b16 %v1070
        %v1145 = vunpack.c.l.b16 %v1071
        %v1146 = vunpack.c.h.b16 %v1071
        %v1147 = vunpack.c.l.b16 %v1072
        %v1148 = vunpack.c.l.b16 %v1073
        %v1149 = vunpack.c.h.b16 %v1073
        %v1150 = vunpack.c.l.b16 %v1074
        %v1151 = vunpack.c.l.b16 %v1075
        %v1152 = vunpack.c.h.b16 %v1075
        %v1153 = vunpack.c.l.b16 %v1076
        %v1154 = vunpack.c.l.b16 %v1077
        %v1155 = vunpack.c.h.b16 %v1077
        %v1156 = vunpack.c.l.b16 %v1078
        %v1157 = vunpack.c.l.b16 %v1079
        %v1158 = vunpack.c.h.b16 %v1079
        %v1159 = vunpack.c.l.b16 %v1080
        %v1160 = vunpack.c.l.b16 %v1081
        %v1161 = vunpack.c.h.b16 %v1081
        %v1162 = vunpack.c.l.b16 %v1082
        %v1163 = vunpack.c.l.b16 %v1083
        %v1164 = vunpack.c.h.b16 %v1083
        %v1165 = vunpack.c.l.b16 %v1084
        %v1166 = vpack.c.b16 %v1121, %v1118
        %v1167 = vpack.c.b16 %v1122, %v1119
        %v1168 = vpack.c.b16 %v1123, %v1120
        %v1169 = vpack.c.b16 %v1127, %v1124
        %v1170 = vpack.c.b16 %v1128, %v1125
        %v1171 = vpack.c.b16 %v1129, %v1126
        %v1172 = vpack.c.b16 %v1133, %v1130
        %v1173 = vpack.c.b16 %v1134, %v1131
        %v1174 = vpack.c.b16 %v1135, %v1132
        %v1175 = vpack.c.b16 %v1139, %v1136
        %v1176 = vpack.c.b16 %v1140, %v1137
        %v1177 = vpack.c.b16 %v1141, %v1138
        %v1178 = vpack.c.b16 %v1145, %v1142
        %v1179 = vpack.c.b16 %v1146, %v1143
        %v1180 = vpack.c.b16 %v1147, %v1144
        %v1181 = vpack.c.b16 %v1151, %v1148
        %v1182 = vpack.c.b16 %v1152, %v1149
        %v1183 = vpack.c.b16 %v1153, %v1150
        %v1184 = vpack.c.b16 %v1157, %v1154
        %v1185 = vpack.c.b16 %v1158, %v1155
        %v1186 = vpack.c.b16 %v1159, %v1156
        %v1187 = vpack.c.b16 %v1163, %v1160
        %v1188 = vpack.c.b16 %v1164, %v1161
        %v1189 = vpack.c.b16 %v1165, %v1162
        %1214 = vmatpush.bf16.msra.mxu0 %v1187
        %1215 = vmatpush.bf16.msra.mxu0 %v1184
        %1216 = vmatpush.bf16.msra.mxu0 %v1181
        %1217 = vmatpush.bf16.msra.mxu0 %v1178
        %1218 = vmatpush.bf16.msra.mxu0 %v1175
        %1219 = vmatpush.bf16.msra.mxu0 %v1172
        %1220 = vmatpush.bf16.msra.mxu0 %v1169
        %1221 = vmatpush.bf16.msra.mxu0 %v1166
        %1222 = vmatmul.bf16.gmra.mxu0 %v1052
        %v1223 = vpop.f32.mrf.mxu0
        %v1224 = vadd.f32 0.0, %v1223
        %v1225 = vpop.f32.mrf.mxu0
        %1226 = vdwg.mxu0
        %1227 = vmatpush.bf16.msra.mxu0 %v1188
        %1228 = vmatpush.bf16.msra.mxu0 %v1185
        %1229 = vmatpush.bf16.msra.mxu0 %v1182
        %1230 = vmatpush.bf16.msra.mxu0 %v1179
        %1231 = vmatpush.bf16.msra.mxu0 %v1176
        %1232 = vmatpush.bf16.msra.mxu0 %v1173
        %1233 = vmatpush.bf16.msra.mxu0 %v1170
        %1234 = vmatpush.bf16.msra.mxu0 %v1167
        %1235 = vmatmul.bf16.gmra.mxu0 %v1052
        %v1236 = vpop.f32.mrf.mxu0
        %v1237 = vadd.f32 0.0, %v1236
        %v1238 = vpop.f32.mrf.mxu0
        %1239 = vdwg.mxu0
        %1240 = vmatpush.bf16.msra.mxu0 %v1189
        %1241 = vmatpush.bf16.msra.mxu0 %v1186
        %1242 = vmatpush.bf16.msra.mxu0 %v1183
        %1243 = vmatpush.bf16.msra.mxu0 %v1180
        %1244 = vmatpush.bf16.msra.mxu0 %v1177
        %1245 = vmatpush.bf16.msra.mxu0 %v1174
        %1246 = vmatpush.bf16.msra.mxu0 %v1171
        %1247 = vmatpush.bf16.msra.mxu0 %v1168
        %1248 = vmatmul.bf16.gmra.mxu0 %v1052
        %v1249 = vpop.f32.mrf.mxu0
        %v1250 = vadd.f32 0.0, %v1249
        %v1251 = vpop.f32.mrf.mxu0
        %1252 = vdwg.mxu0
        %v1253 = vrot.slane %v1224, 7
        %v1254 = vmul.f32 %v639, %v1253
        %v1255 = vadd.f32 %v1237, %v1254
        %v1256 = vrot.slane %v1250, 1
        %v1257 = vmul.f32 %v649, %v1256
        %v1258 = vadd.f32 %v1255, %v1257
        %v1260 = vperm.slane %v1085, 0
        %v1262 = vadd.f32 %v1258, %v1260
        %v1263 = vmax.f32 %v1262, 0.0
        %v1264 = vld [vmem:[%s9] sm:$0xf]
        %v1265 = vld [vmem:[%s9 + $0x4] sm:$0xf]
        %v1266 = vld [vmem:[%s9 + $0x8] sm:$0xf]
        %v1267 = vld [vmem:[%s9 + $0xc] sm:$0xf]
        %v1268 = vld [vmem:[%s9 + $0x10] sm:$0xf]
        %v1269 = vld [vmem:[%s9 + $0x14] sm:$0xf]
        %v1270 = vld [vmem:[%s9 + $0x18] sm:$0xf]
        %v1271 = vld [vmem:[%s9 + $0x1c] sm:$0xf]
        %v1272 = vld [vmem:[%s9 + $0x20] sm:$0xf]
        %v1273 = vld [vmem:[%s9 + $0x24] sm:$0xf]
        %v1274 = vld [vmem:[%s9 + $0x28] sm:$0xf]
        %v1275 = vld [vmem:[%s9 + $0x2c] sm:$0xf]
        %v1276 = vld [vmem:[%s9 + $0x30] sm:$0xf]
        %v1277 = vld [vmem:[%s9 + $0x34] sm:$0xf]
        %v1278 = vld [vmem:[%s9 + $0x38] sm:$0xf]
        %v1279 = vld [vmem:[%s9 + $0x3c] sm:$0xf]
        %v1280 = vld [vmem:[%s10] sm:$0x3]
        %1281 = vrot.lane.b32.xlu0 %v1263, 112
        %v1282 = vpop.permute.xlu0 %1281
        %v1283 = vmax.f32 %v1263, %v1282
        %v1284 = vpack.c.bf16 %v1283, %v1283
        %v1301 = vunpack.c.l.b16 %v1264
        %v1302 = vunpack.c.l.b16 %v1265
        %v1303 = vunpack.c.l.b16 %v1266
        %v1304 = vunpack.c.l.b16 %v1267
        %v1305 = vunpack.c.l.b16 %v1268
        %v1306 = vunpack.c.l.b16 %v1269
        %v1307 = vunpack.c.l.b16 %v1270
        %v1308 = vunpack.c.l.b16 %v1271
        %v1309 = vunpack.c.l.b16 %v1272
        %v1310 = vunpack.c.l.b16 %v1273
        %v1311 = vunpack.c.l.b16 %v1274
        %v1312 = vunpack.c.l.b16 %v1275
        %v1313 = vunpack.c.l.b16 %v1276
        %v1314 = vunpack.c.l.b16 %v1277
        %v1315 = vunpack.c.l.b16 %v1278
        %v1316 = vunpack.c.l.b16 %v1279
        %v1317 = vpack.c.b16 %v1302, %v1301
        %v1318 = vpack.c.b16 %v1304, %v1303
        %v1319 = vpack.c.b16 %v1306, %v1305
        %v1320 = vpack.c.b16 %v1308, %v1307
        %v1321 = vpack.c.b16 %v1310, %v1309
        %v1322 = vpack.c.b16 %v1312, %v1311
        %v1323 = vpack.c.b16 %v1314, %v1313
        %v1324 = vpack.c.b16 %v1316, %v1315
        %1333 = vmatpush.bf16.msra.mxu0 %v1324
        %1334 = vmatpush.bf16.msra.mxu0 %v1323
        %1335 = vmatpush.bf16.msra.mxu0 %v1322
        %1336 = vmatpush.bf16.msra.mxu0 %v1321
        %1337 = vmatpush.bf16.msra.mxu0 %v1320
        %1338 = vmatpush.bf16.msra.mxu0 %v1319
        %1339 = vmatpush.bf16.msra.mxu0 %v1318
        %1340 = vmatpush.bf16.msra.mxu0 %v1317
        %1341 = vmatmul.bf16.gmra.mxu0 %v1284
        %v1342 = vpop.f32.mrf.mxu0
        %v1343 = vadd.f32 0.0, %v1342
        %v1344 = vpop.f32.mrf.mxu0
        %1345 = vdwg.mxu0
        %v1346 = vrot.slane %v1343, 1
        %v1347 = vmax.f32 %v1343, %v1346
        %v1348 = vpack.c.bf16 %v1347, %v1347
        %vm1349 = vcmask 64512
        %v1351 = vsel %vm1349, %v1280, 0
        %vm1353 = vcmask 1043456
        %v1355 = vsel %vm1353, %v1348, 0
        %1357 = vmatpush.bf16.msra.mxu0 0
        %1358 = vmatpush.bf16.msra.mxu0 0
        %1359 = vmatpush.bf16.msra.mxu0 0
        %1360 = vmatpush.bf16.msra.mxu0 0
        %1361 = vmatpush.bf16.msra.mxu0 0
        %1362 = vmatpush.bf16.msra.mxu0 0
        %1363 = vmatpush.bf16.msra.mxu0 0
        %1364 = vmatpush.bf16.msra.mxu0 %v1355
        %1365 = vmatmul.bf16.gmra.mxu0 %v1351
        %v1366 = vpop.f32.mrf.mxu0
        %v1367 = vadd.f32 0.0, %v1366
        %v1368 = vpop.f32.mrf.mxu0
        %1369 = vdwg.mxu0
        %v1370 = vpack.c.bf16 %v1367, %v1367
        %v1371 = vld [vmem:[%s12] sm:$0x1]
        %v1372 = vld [vmem:[#allocation8] sm:$0xf]
        %v1373 = vld [vmem:[#allocation8 + $0x4] sm:$0xf]
        %v1374 = vld [vmem:[#allocation8 + $0x8] sm:$0xf]
        %v1375 = vld [vmem:[#allocation8 + $0xc] sm:$0xf]
        %v1376 = vld [vmem:[#allocation8 + $0x10] sm:$0xf]
        %v1377 = vld [vmem:[#allocation8 + $0x14] sm:$0xf]
        %v1378 = vld [vmem:[#allocation8 + $0x18] sm:$0xf]
        %v1379 = vld [vmem:[#allocation8 + $0x1c] sm:$0xf]
        %v1380 = vld [vmem:[%s14] sm:$0x1]
        %v1381 = vld [vmem:[#allocation10] sm:$0xf]
        %v1382 = vld [vmem:[#allocation10 + $0x4] sm:$0xf]
        %v1383 = vld [vmem:[#allocation10 + $0x8] sm:$0xf]
        %v1384 = vld [vmem:[#allocation10 + $0xc] sm:$0xf]
        %v1385 = vld [vmem:[#allocation10 + $0x10] sm:$0xf]
        %v1386 = vld [vmem:[#allocation10 + $0x14] sm:$0xf]
        %v1387 = vld [vmem:[#allocation10 + $0x18] sm:$0xf]
        %v1388 = vld [vmem:[#allocation10 + $0x1c] sm:$0xf]
        %v1389 = vld [vmem:[%s16] sm:$0x1]
        %v1390 = vld [vmem:[%s11] sm:$0xf]
        %v1391 = vld [vmem:[%s11 + $0x4] sm:$0xf]
        %v1392 = vld [vmem:[%s11 + $0x8] sm:$0xf]
        %v1393 = vld [vmem:[%s11 + $0xc] sm:$0xf]
        %v1394 = vld [vmem:[%s11 + $0x10] sm:$0xf]
        %v1395 = vld [vmem:[%s11 + $0x14] sm:$0xf]
        %v1396 = vld [vmem:[%s11 + $0x18] sm:$0xf]
        %v1397 = vld [vmem:[%s11 + $0x1c] sm:$0xf]
        %v1406 = vunpack.c.l.b16 %v1390
        %v1407 = vunpack.c.l.b16 %v1391
        %v1408 = vunpack.c.l.b16 %v1392
        %v1409 = vunpack.c.l.b16 %v1393
        %v1410 = vunpack.c.l.b16 %v1394
        %v1411 = vunpack.c.l.b16 %v1395
        %v1412 = vunpack.c.l.b16 %v1396
        %v1413 = vunpack.c.l.b16 %v1397
        %v1414 = vpack.c.b16 %v1407, %v1406
        %v1415 = vpack.c.b16 %v1409, %v1408
        %v1416 = vpack.c.b16 %v1411, %v1410
        %v1417 = vpack.c.b16 %v1413, %v1412
        %v1423 = vsel %vm736, %v1370, 0
        %1425 = vmatpush.bf16.msra.mxu0 0
        %1426 = vmatpush.bf16.msra.mxu0 0
        %1427 = vmatpush.bf16.msra.mxu0 0
        %1428 = vmatpush.bf16.msra.mxu0 0
        %1429 = vmatpush.bf16.msra.mxu0 %v1417
        %1430 = vmatpush.bf16.msra.mxu0 %v1416
        %1431 = vmatpush.bf16.msra.mxu0 %v1415
        %1432 = vmatpush.bf16.msra.mxu0 %v1414
        %1433 = vmatmul.bf16.gmra.mxu0 %v1423
        %v1434 = vpop.f32.mrf.mxu0
        %v1435 = vadd.f32 0.0, %v1434
        %v1436 = vpop.f32.mrf.mxu0
        %1437 = vdwg.mxu0
        %v1438 = vadd.f32 %v1371, %v1435
        %s1439 = scalar_lea.vmem %s11, 32
        %v1440 = vld [vmem:[%s1439] sm:$0xf]
        %v1441 = vld [vmem:[%s1439 + $0x4] sm:$0xf]
        %v1442 = vld [vmem:[%s1439 + $0x8] sm:$0xf]
        %v1443 = vld [vmem:[%s1439 + $0xc] sm:$0xf]
        %v1444 = vld [vmem:[%s1439 + $0x10] sm:$0xf]
        %v1445 = vld [vmem:[%s1439 + $0x14] sm:$0xf]
        %v1446 = vld [vmem:[%s1439 + $0x18] sm:$0xf]
        %v1447 = vld [vmem:[%s1439 + $0x1c] sm:$0xf]
        %v1449 = vunpack.c.l.b16 %v1370
        %v1450 = vpack.c.b16 %v1449, %v1449
        %v1452 = vshrl.u32 %v1450, 16
        %v1462 = vunpack.c.l.b16 %v1440
        %v1463 = vunpack.c.l.b16 %v1441
        %v1464 = vunpack.c.l.b16 %v1442
        %v1465 = vunpack.c.l.b16 %v1443
        %v1466 = vunpack.c.l.b16 %v1444
        %v1467 = vunpack.c.l.b16 %v1445
        %v1468 = vunpack.c.l.b16 %v1446
        %v1469 = vunpack.c.l.b16 %v1447
        %v1470 = vpack.c.b16 %v1463, %v1462
        %v1471 = vpack.c.b16 %v1465, %v1464
        %v1472 = vpack.c.b16 %v1467, %v1466
        %v1473 = vpack.c.b16 %v1469, %v1468
        %v1479 = vsel %vm736, %v1452, 0
        %1481 = vmatpush.bf16.msra.mxu0 0
        %1482 = vmatpush.bf16.msra.mxu0 0
        %1483 = vmatpush.bf16.msra.mxu0 0
        %1484 = vmatpush.bf16.msra.mxu0 0
        %1485 = vmatpush.bf16.msra.mxu0 %v1473
        %1486 = vmatpush.bf16.msra.mxu0 %v1472
        %1487 = vmatpush.bf16.msra.mxu0 %v1471
        %1488 = vmatpush.bf16.msra.mxu0 %v1470
        %1489 = vmatmul.bf16.gmra.mxu0 %v1479
        %v1490 = vpop.f32.mrf.mxu0
        %v1491 = vadd.f32 0.0, %v1490
        %v1492 = vpop.f32.mrf.mxu0
        %1493 = vdwg.mxu0
        %v1494 = vadd.f32 %v1438, %v1491
        %s1495 = scalar_lea.vmem %s11, 64
        %v1496 = vld [vmem:[%s1495] sm:$0xf]
        %v1497 = vld [vmem:[%s1495 + $0x4] sm:$0xf]
        %v1498 = vld [vmem:[%s1495 + $0x8] sm:$0xf]
        %v1499 = vld [vmem:[%s1495 + $0xc] sm:$0xf]
        %v1500 = vld [vmem:[%s1495 + $0x10] sm:$0xf]
        %v1501 = vld [vmem:[%s1495 + $0x14] sm:$0xf]
        %v1502 = vld [vmem:[%s1495 + $0x18] sm:$0xf]
        %v1503 = vld [vmem:[%s1495 + $0x1c] sm:$0xf]
        %v1504 = vrot.slane %v1450, 1
        %v1513 = vunpack.c.l.b16 %v1496
        %v1514 = vunpack.c.l.b16 %v1497
        %v1515 = vunpack.c.l.b16 %v1498
        %v1516 = vunpack.c.l.b16 %v1499
        %v1517 = vunpack.c.l.b16 %v1500
        %v1518 = vunpack.c.l.b16 %v1501
        %v1519 = vunpack.c.l.b16 %v1502
        %v1520 = vunpack.c.l.b16 %v1503
        %v1521 = vpack.c.b16 %v1514, %v1513
        %v1522 = vpack.c.b16 %v1516, %v1515
        %v1523 = vpack.c.b16 %v1518, %v1517
        %v1524 = vpack.c.b16 %v1520, %v1519
        %v1530 = vsel %vm736, %v1504, 0
        %1532 = vmatpush.bf16.msra.mxu0 0
        %1533 = vmatpush.bf16.msra.mxu0 0
        %1534 = vmatpush.bf16.msra.mxu0 0
        %1535 = vmatpush.bf16.msra.mxu0 0
        %1536 = vmatpush.bf16.msra.mxu0 %v1524
        %1537 = vmatpush.bf16.msra.mxu0 %v1523
        %1538 = vmatpush.bf16.msra.mxu0 %v1522
        %1539 = vmatpush.bf16.msra.mxu0 %v1521
        %1540 = vmatmul.bf16.gmra.mxu0 %v1530
        %v1541 = vpop.f32.mrf.mxu0
        %v1542 = vadd.f32 0.0, %v1541
        %v1543 = vpop.f32.mrf.mxu0
        %1544 = vdwg.mxu0
        %v1545 = vadd.f32 %v1494, %v1542
        %s1546 = scalar_lea.vmem %s11, 96
        %v1547 = vld [vmem:[%s1546] sm:$0xf]
        %v1548 = vld [vmem:[%s1546 + $0x4] sm:$0xf]
        %v1549 = vld [vmem:[%s1546 + $0x8] sm:$0xf]
        %v1550 = vld [vmem:[%s1546 + $0xc] sm:$0xf]
        %v1551 = vld [vmem:[%s1546 + $0x10] sm:$0xf]
        %v1552 = vld [vmem:[%s1546 + $0x14] sm:$0xf]
        %v1553 = vld [vmem:[%s1546 + $0x18] sm:$0xf]
        %v1554 = vld [vmem:[%s1546 + $0x1c] sm:$0xf]
        %v1555 = vrot.slane %v1452, 1
        %v1564 = vunpack.c.l.b16 %v1547
        %v1565 = vunpack.c.l.b16 %v1548
        %v1566 = vunpack.c.l.b16 %v1549
        %v1567 = vunpack.c.l.b16 %v1550
        %v1568 = vunpack.c.l.b16 %v1551
        %v1569 = vunpack.c.l.b16 %v1552
        %v1570 = vunpack.c.l.b16 %v1553
        %v1571 = vunpack.c.l.b16 %v1554
        %v1572 = vpack.c.b16 %v1565, %v1564
        %v1573 = vpack.c.b16 %v1567, %v1566
        %v1574 = vpack.c.b16 %v1569, %v1568
        %v1575 = vpack.c.b16 %v1571, %v1570
        %v1581 = vsel %vm736, %v1555, 0
        %1583 = vmatpush.bf16.msra.mxu0 0
        %1584 = vmatpush.bf16.msra.mxu0 0
        %1585 = vmatpush.bf16.msra.mxu0 0
        %1586 = vmatpush.bf16.msra.mxu0 0
        %1587 = vmatpush.bf16.msra.mxu0 %v1575
        %1588 = vmatpush.bf16.msra.mxu0 %v1574
        %1589 = vmatpush.bf16.msra.mxu0 %v1573
        %1590 = vmatpush.bf16.msra.mxu0 %v1572
        %1591 = vmatmul.bf16.gmra.mxu0 %v1581
        %v1592 = vpop.f32.mrf.mxu0
        %v1593 = vadd.f32 0.0, %v1592
        %v1594 = vpop.f32.mrf.mxu0
        %1595 = vdwg.mxu0
        %v1596 = vadd.f32 %v1545, %v1593
        %v1597 = vmax.f32 %v1596, 0.0
        %v1598 = vpack.c.bf16 %v1597, %v1597
        %v1607 = vunpack.c.l.b16 %v1372
        %v1608 = vunpack.c.l.b16 %v1373
        %v1609 = vunpack.c.l.b16 %v1374
        %v1610 = vunpack.c.l.b16 %v1375
        %v1611 = vunpack.c.l.b16 %v1376
        %v1612 = vunpack.c.l.b16 %v1377
        %v1613 = vunpack.c.l.b16 %v1378
        %v1614 = vunpack.c.l.b16 %v1379
        %v1615 = vpack.c.b16 %v1608, %v1607
        %v1616 = vpack.c.b16 %v1610, %v1609
        %v1617 = vpack.c.b16 %v1612, %v1611
        %v1618 = vpack.c.b16 %v1614, %v1613
        %v1624 = vsel %vm736, %v1598, 0
        %1626 = vmatpush.bf16.msra.mxu0 0
        %1627 = vmatpush.bf16.msra.mxu0 0
        %1628 = vmatpush.bf16.msra.mxu0 0
        %1629 = vmatpush.bf16.msra.mxu0 0
        %1630 = vmatpush.bf16.msra.mxu0 %v1618
        %1631 = vmatpush.bf16.msra.mxu0 %v1617
        %1632 = vmatpush.bf16.msra.mxu0 %v1616
        %1633 = vmatpush.bf16.msra.mxu0 %v1615
        %1634 = vmatmul.bf16.gmra.mxu0 %v1624
        %v1635 = vpop.f32.mrf.mxu0
        %v1636 = vadd.f32 %v1380, %v1635
        %v1637 = vpop.f32.mrf.mxu0
        %1638 = vdwg.mxu0
        %v1639 = vmax.f32 %v1636, 0.0
        %v1640 = vpack.c.bf16 %v1639, %v1639
        %v1649 = vunpack.c.l.b16 %v1381
        %v1650 = vunpack.c.l.b16 %v1382
        %v1651 = vunpack.c.l.b16 %v1383
        %v1652 = vunpack.c.l.b16 %v1384
        %v1653 = vunpack.c.l.b16 %v1385
        %v1654 = vunpack.c.l.b16 %v1386
        %v1655 = vunpack.c.l.b16 %v1387
        %v1656 = vunpack.c.l.b16 %v1388
        %v1657 = vpack.c.b16 %v1650, %v1649
        %v1658 = vpack.c.b16 %v1652, %v1651
        %v1659 = vpack.c.b16 %v1654, %v1653
        %v1660 = vpack.c.b16 %v1656, %v1655
        %v1666 = vsel %vm736, %v1640, 0
        %1668 = vmatpush.bf16.msra.mxu0 0
        %1669 = vmatpush.bf16.msra.mxu0 0
        %1670 = vmatpush.bf16.msra.mxu0 0
        %1671 = vmatpush.bf16.msra.mxu0 0
        %1672 = vmatpush.bf16.msra.mxu0 %v1660
        %1673 = vmatpush.bf16.msra.mxu0 %v1659
        %1674 = vmatpush.bf16.msra.mxu0 %v1658
        %1675 = vmatpush.bf16.msra.mxu0 %v1657
        %1676 = vmatmul.bf16.gmra.mxu0 %v1666
        %v1677 = vpop.f32.mrf.mxu0
        %v1678 = vadd.f32 %v1389, %v1677
        %v1679 = vpop.f32.mrf.mxu0
        %1680 = vdwg.mxu0
        %vm1681 = vcmask 253952
        %1682 = vst.msk [vmem:[%s623] sm:$0x1] %vm1681, %v1678
        %s1683 = sand.u32 %s404, 1
        %s1684 = scalar_lea.sflag [#allocation4], %s1683
        %s1685 = sand.u32 %s404, 1
        %s1686 = scalar_lea.vmem [#allocation11], %s1685
        // Predicated region
        $region109: #{vgg_forward.1} parent=87 // pred_check
          %p1687 = pneg %p414
        $region110: #{vgg_forward.1} parent=87 // pred_check_branch
          %1689 = sbr.rel (%p1687) target = $region112
        $region111: #{vgg_forward.1} parent=87 // pred_region
          %1691 = vsyncadd %s1684, 0
          %s1692 = scalar_lea.hbm %s17, %s34
          %s1694 = sshll.u32 %s1686, 4
          %s1695 = int_to_ptr.vmem [resolvable:$true] %s1694
          %s1696 = sshll.u32 %s1692, 4
          %s1697 = int_to_ptr.hbm [resolvable:$true] %s1696
          %1699 = dma.vmem_to_hbm [thread:$0]  %s1695, 16, %s1697, %s1684
        $region112: #{vgg_forward.1} parent=87 // pred_fallthru
          _
      $region88: #{vgg_forward.1} parent=5 // pred_fallthru
        _
      %p1700 = scmp.le.s32.totalorder 2, %s29
      // Predicated region
      $region113: #{vgg_forward.1} parent=5 // pred_check
        %p1701 = pneg %p1700
      $region114: #{vgg_forward.1} parent=5 // pred_check_branch
        %1703 = sbr.rel (%p1701) target = $region116
      $region115: #{vgg_forward.1} parent=5 // pred_region
        %s1704 = ssub.s32 %s29, 2
        // Predicated region
        $region117: #{vgg_forward.1} parent=115 // pred_check
          %p1705 = pneg %p420
        $region118: #{vgg_forward.1} parent=115 // pred_check_branch
          %1707 = sbr.rel (%p1705) target = $region120
        $region119: #{vgg_forward.1} parent=115 // pred_region
          %s1708 = sand.u32 %s405, 1
          %s1709 = scalar_lea.sflag [#allocation4], %s1708
          %s1710 = sand.u32 %s405, 1
          %s1711 = scalar_lea.vmem [#allocation11], %s1710
          %1713 = dma.done %s1709, 16
        $region120: #{vgg_forward.1} parent=115 // pred_fallthru
          _
      $region116: #{vgg_forward.1} parent=5 // pred_fallthru
        _
    $region6: #{vgg_forward.1} parent=1 // loop_footer
      %s33 = sadd.s32 1, %s29
    $region7: #{vgg_forward.1} parent=1 // loop_footer_branch
      %28 = sbr.rel target = $region3
    $region8: #{vgg_forward.1} parent=1 // loop_exit
      _
    %1714 = vsyncpa [#allocation3], 1
    %s1715 = scalar_lea.sflag [#allocation3], 1
    %1716 = vsyncpa %s1715, 1
    %1717 = vsyncpa [#allocation6], 1
    %1718 = vsyncpa [#allocation9], 1
    %1719 = vsyncpa [#allocation4], 1
    %s1720 = scalar_lea.sflag [#allocation4], 1
    %1721 = vsyncpa %s1720, 1

</llo_original>
